<compile_context>
chip_gen: v6e
topology: v6e:2x2x1
jax: 0.10.0
libtpu: 0.0.40
codegen_flags: <defaults>
</compile_context>

<pallas_src>
import math
import functools

import numpy as np
import jax
import jax.numpy as jnp
from jax.experimental import pallas as pl
from jax.experimental.pallas import tpu as pltpu


# ----- small, module-consistent hyperparameters -----
D_MODEL = 32
D_STATE = 8
D_CONV = 2
EXPAND = 1
D_INNER = int(EXPAND * D_MODEL)
DT_RANK = math.ceil(D_MODEL / 16)          # 'auto' -> 2
BATCH = 2
SEQLEN = 8
DT_MIN, DT_MAX, DT_INIT_FLOOR = 0.001, 0.1, 1e-4


def mamba_kernel(h2_ref,     # (2*LB, d_model) rows 0:LB hidden, rows LB:2LB hidden shifted by 1 token
                 wxz_ref,    # (d_model, 2*d_inner)  in_proj.weight.T  [x | z]
                 wbig_ref,   # (d_inner, 2*NS + d_inner + d_model)
                             #   [wB lane-expanded | wC lane-expanded | wdt folded | out_proj.T]
                 small_ref,  # (8, NS) rows: conv tap prev, conv tap cur, conv_b, dt_bias, D, A_log packed
                 t_ref,      # (d_inner, NS) 0/1 tiling helper: T[d, n*d_inner + d] = 1
                 o_ref,      # (LB, d_model)
                 *, nb, seq_len):
    LB = nb * seq_len
    d_model = h2_ref.shape[1]
    d_inner = wxz_ref.shape[1] // 2
    NS = t_ref.shape[1]                    # d_state * d_inner
    f32 = jnp.float32

    # ---- fused in_proj over [hidden ; shifted hidden]: x, z and the causal-conv
    #      predecessor x_prev all come out of ONE MXU matmul. ----
    xz2 = jnp.dot(h2_ref[...], wxz_ref[...], preferred_element_type=f32)   # (2LB, 2*d_inner)
    x_cur = xz2[:LB, :d_inner]
    z = xz2[:LB, d_inner:]
    x_prev = xz2[LB:, :d_inner]

    # ---- causal depthwise conv1d (d_conv == 2) + SiLU ----
    # TODO(synk): general d_conv would need d_conv-1 shifted hidden copies.
    w_prev = small_ref[0:1, :d_inner]
    w_cur = small_ref[1:2, :d_inner]
    c_bias = small_ref[2:3, :d_inner]
    xc = x_cur * w_cur + x_prev * w_prev + c_bias
    x = xc * jax.nn.sigmoid(xc)                                            # SiLU

    # ---- fused x_proj: lane-expanded B, lane-expanded C and dt in ONE matmul ----
    proj = jnp.dot(x, wbig_ref[...], preferred_element_type=f32)           # (LB, 2NS+d_inner+d_model)
    b_exp = proj[:, :NS]                     # col n*d_inner+d = B[l, n]
    c_exp = proj[:, NS:2 * NS]               # col n*d_inner+d = C[l, n]
    dt = proj[:, 2 * NS:2 * NS + d_inner]
    delta = jax.nn.softplus(dt + small_ref[3:4, :d_inner])                 # (LB, d_inner)

    # ---- lane-dense scan precompute: everything packed as (LB, NS) full vregs.
    #      All exp()/broadcast work is hoisted out of the serial recurrence. ----
    t_mat = t_ref[...]                                                     # (d_inner, NS)
    a_row = -jnp.exp(small_ref[5:6, :])                                    # (1, NS): A[d, n] packed
    dd = jnp.dot(jnp.concatenate([delta, delta * x], axis=0), t_mat,
                 preferred_element_type=f32)                               # (2LB, NS)
    dA = jnp.exp(dd[:LB] * a_row)                                          # (LB, NS)
    dBu = dd[LB:] * b_exp                                                  # (LB, NS)

    # ---- serial selective scan: all nb batch rows advance each step; per-step
    #      critical path is one FMA on the (nb, NS) carry.  The d_state reduce
    #      (tiny MXU dot against the 0/1 helper) branches off the carry chain. ----
    nt_dims = (((1,), (1,)), ((), ()))       # contract last dims (A @ B^T)
    h = jnp.zeros((nb, NS), f32)
    ys = []
    for t in range(seq_len):
        lo = t * nb
        h = dA[lo:lo + nb] * h + dBu[lo:lo + nb]
        ys.append(jax.lax.dot_general(h * c_exp[lo:lo + nb], t_mat, nt_dims,
                                      preferred_element_type=f32))         # (nb, d_inner)
    y = jnp.concatenate(ys, axis=0)                                        # (LB, d_inner)

    # ---- D skip connection, SiLU(z) gate, out_proj; single output store ----
    y = y + x * small_ref[4:5, :d_inner]
    y = y * (z * jax.nn.sigmoid(z))
    out_w = wbig_ref[:, 2 * NS + d_inner:2 * NS + d_inner + d_model]       # (d_inner, d_model)
    o_ref[...] = jnp.dot(y, out_w, preferred_element_type=f32).astype(o_ref.dtype)


def _pack_params(in_w, conv_w, conv_b, x_proj_w, dt_proj_w, dt_bias, A_log, D_p, out_w):
    """Offline parameter packing / folding (plain JAX; layout plumbing only)."""
    d_inner = D_p.shape[0]
    d_state = A_log.shape[1]
    dt_rank = dt_proj_w.shape[1]
    ns = d_state * d_inner
    assert conv_w.shape[2] == 2, "kernel implements the module default d_conv == 2"

    wxz = in_w.T                                                     # (d_model, 2*d_inner)
    # Fold dt_proj into the x_proj dt block: x @ (W_xdt.T @ W_dt.T).
    wdt = jnp.dot(x_proj_w[:dt_rank, :].T, dt_proj_w.T,
                  precision=jax.lax.Precision.HIGHEST)               # (d_inner, d_inner)
    wB = x_proj_w[dt_rank:dt_rank + d_state, :].T                    # (d_inner, d_state)
    wC = x_proj_w[dt_rank + d_state:, :].T                           # (d_inner, d_state)
    # Fold the state->lane expansion (state column repeated d_inner times) into
    # the weights so B/C come out of the x_proj matmul already lane-packed.
    wB_rep = jnp.repeat(wB, d_inner, axis=1)                         # (d_inner, ns)
    wC_rep = jnp.repeat(wC, d_inner, axis=1)                         # (d_inner, ns)
    wbig = jnp.concatenate([wB_rep, wC_rep, wdt, out_w.T], axis=1)   # (d_inner, 2ns+d_inner+d_model)

    small = jnp.zeros((8, ns), jnp.float32)
    small = small.at[0, :d_inner].set(conv_w[:, 0, 0])               # prev-token tap
    small = small.at[1, :d_inner].set(conv_w[:, 0, 1])               # current-token tap
    small = small.at[2, :d_inner].set(conv_b)
    small = small.at[3, :d_inner].set(dt_bias)
    small = small.at[4, :d_inner].set(D_p)
    small = small.at[5, :].set(A_log.T.reshape(-1))                  # col n*d_inner+d = A_log[d, n]

    t_np = (np.arange(ns)[None, :] % d_inner == np.arange(d_inner)[:, None])
    t_mat = jnp.asarray(t_np.astype(np.float32))                     # (d_inner, ns)
    return wxz, wbig, small, t_mat


@functools.partial(jax.jit, static_argnames=("batch_parallel_grid",))
def mamba_forward(hidden, params, *, batch_parallel_grid=False):
    (in_w, conv_w, conv_b, x_proj_w, dt_proj_w,
     dt_bias, A_log, D_p, out_w) = params
    B, L, d_model = hidden.shape
    wxz, wbig, small, t_mat = _pack_params(in_w, conv_w, conv_b, x_proj_w,
                                           dt_proj_w, dt_bias, A_log, D_p, out_w)

    # Token t-1 for every position (zeros at t == 0): feeding it through the same
    # in_proj matmul gives the causal-conv predecessor with no in-kernel shift.
    h_prev = jnp.pad(hidden, ((0, 0), (1, 0), (0, 0)))[:, :L, :]

    if batch_parallel_grid:
        # grid=(B,): one batch per grid step ("parallel" -> one per TensorCore on v7x).
        nb, steps = 1, B
        h2 = jnp.concatenate([hidden, h_prev], axis=1).reshape(B * 2 * L, d_model)
    else:
        # Whole problem in a single grid step; batch folded into the rows
        # (time-major, row = t*B + b) so all batches advance together in the scan.
        nb, steps = B, 1
        cur = jnp.transpose(hidden, (1, 0, 2)).reshape(B * L, d_model)
        prev = jnp.transpose(h_prev, (1, 0, 2)).reshape(B * L, d_model)
        h2 = jnp.concatenate([cur, prev], axis=0)

    LB = nb * L
    kernel = functools.partial(mamba_kernel, nb=nb, seq_len=L)

    out_flat = pl.pallas_call(
        kernel,
        out_shape=jax.ShapeDtypeStruct((B * L, d_model), jnp.float32),
        grid_spec=pltpu.PrefetchScalarGridSpec(
            num_scalar_prefetch=0,
            grid=(steps,),
            in_specs=[
                pl.BlockSpec((2 * LB, d_model), lambda i: (i, 0)),
                pl.BlockSpec(wxz.shape, lambda i: (0, 0)),
                pl.BlockSpec(wbig.shape, lambda i: (0, 0)),
                pl.BlockSpec(small.shape, lambda i: (0, 0)),
                pl.BlockSpec(t_mat.shape, lambda i: (0, 0)),
            ],
            out_specs=pl.BlockSpec((LB, d_model), lambda i: (i, 0)),
        ),
        compiler_params=pltpu.CompilerParams(
            dimension_semantics=(("parallel",) if batch_parallel_grid
                                 else ("arbitrary",))),
    )(h2, wxz, wbig, small, t_mat)

    if batch_parallel_grid:
        return out_flat.reshape(B, L, d_model)
    return jnp.transpose(out_flat.reshape(L, B, d_model), (1, 0, 2))


# ----- pure-JAX reference (matches the PyTorch slow-path semantics) -----
def mamba_reference(hidden, in_w, conv_w, conv_b, x_proj_w, dt_proj_w,
                    dt_bias, A_log, D_p, out_w):
    P = jax.lax.Precision.HIGHEST
    B, L, _ = hidden.shape
    d_inner = D_p.shape[0]
    xz = jnp.einsum('bld,ed->ble', hidden, in_w, precision=P)
    x, z = xz[..., :d_inner], xz[..., d_inner:]
    wt = conv_w[:, 0, :]                                   # (d_inner, d_conv)
    x_pad = jnp.pad(x, ((0, 0), (D_CONV - 1, 0), (0, 0)))
    xc = jnp.zeros_like(x)
    for w in range(D_CONV):
        xc = xc + x_pad[:, w:w + L, :] * wt[:, w][None, None, :]
    xc = xc + conv_b[None, None, :]
    x = jax.nn.silu(xc)
    x_dbl = jnp.einsum('bld,ed->ble', x, x_proj_w, precision=P)
    dt_in = x_dbl[..., :DT_RANK]
    Bm = x_dbl[..., DT_RANK:DT_RANK + D_STATE]
    Cm = x_dbl[..., DT_RANK + D_STATE:]
    dt = jnp.einsum('blr,dr->bld', dt_in, dt_proj_w, precision=P)
    delta = jax.nn.softplus(dt + dt_bias[None, None, :])
    A = -jnp.exp(A_log)                                     # (d_inner, d_state)
    dA = jnp.exp(jnp.einsum('bld,dn->bldn', delta, A, precision=P))
    dBu = jnp.einsum('bld,bln,bld->bldn', delta, Bm, x, precision=P)

    def scan_fn(h, inp):
        dA_t, dBu_t, C_t = inp
        h = dA_t * h + dBu_t
        y = jnp.einsum('bdn,bn->bd', h, C_t, precision=P)
        return h, y

    h0 = jnp.zeros((B, d_inner, D_STATE), jnp.float32)
    _, ys = jax.lax.scan(
        scan_fn, h0,
        (dA.transpose(1, 0, 2, 3), dBu.transpose(1, 0, 2, 3), Cm.transpose(1, 0, 2)))
    y = ys.transpose(1, 0, 2)                               # (B, L, d_inner)
    y = y + x * D_p[None, None, :]
    y = y * jax.nn.silu(z)
    return jnp.einsum('bld,md->blm', y, out_w, precision=P)


def init_params(key):
    ks = jax.random.split(key, 6)
    bound_in = 1.0 / math.sqrt(D_MODEL)
    in_w = jax.random.uniform(ks[0], (2 * D_INNER, D_MODEL), jnp.float32,
                              -bound_in, bound_in)
    bound_c = 1.0 / math.sqrt(1 * D_CONV)
    conv_w = jax.random.uniform(ks[1], (D_INNER, 1, D_CONV), jnp.float32,
                                -bound_c, bound_c)
    conv_b = jax.random.uniform(ks[2], (D_INNER,), jnp.float32, -bound_c, bound_c)
    bound_x = 1.0 / math.sqrt(D_INNER)
    x_proj_w = jax.random.uniform(ks[3], (DT_RANK + 2 * D_STATE, D_INNER),
                                  jnp.float32, -bound_x, bound_x)
    dt_init_std = DT_RANK ** (-0.5) * 1.0
    dt_proj_w = jax.random.uniform(ks[4], (D_INNER, DT_RANK), jnp.float32,
                                   -dt_init_std, dt_init_std)
    dt = jnp.exp(jax.random.uniform(ks[5], (D_INNER,), jnp.float32)
                 * (math.log(DT_MAX) - math.log(DT_MIN)) + math.log(DT_MIN))
    dt = jnp.clip(dt, DT_INIT_FLOOR, None)
    dt_bias = dt + jnp.log(-jnp.expm1(-dt))                 # inv_dt (softplus inverse)
    A = jnp.tile(jnp.arange(1, D_STATE + 1, dtype=jnp.float32)[None, :], (D_INNER, 1))
    A_log = jnp.log(A)                                      # (d_inner, d_state)
    D_p = jnp.ones((D_INNER,), jnp.float32)
    bound_o = 1.0 / math.sqrt(D_INNER)
    out_w = jax.random.uniform(jax.random.PRNGKey(123), (D_MODEL, D_INNER),
                               jnp.float32, -bound_o, bound_o)
    return in_w, conv_w, conv_b, x_proj_w, dt_proj_w, dt_bias, A_log, D_p, out_w


if __name__ == "__main__":
    key = jax.random.PRNGKey(0)
    k_x, k_p = jax.random.split(key)
    hidden = jax.random.normal(k_x, (BATCH, SEQLEN, D_MODEL), jnp.float32)
    params = init_params(k_p)

    ref = jax.block_until_ready(mamba_reference(hidden, *params))

    # Default layout: whole problem in one grid step (best for single-TC v5e/v6e).
    out = jax.block_until_ready(mamba_forward(hidden, params))
    # v7x-friendly layout: one batch per grid step / TensorCore ("parallel").
    out_p = jax.block_until_ready(
        mamba_forward(hidden, params, batch_parallel_grid=True))

    assert out.shape == (BATCH, SEQLEN, D_MODEL)
    assert out_p.shape == (BATCH, SEQLEN, D_MODEL)
    for got in (out, out_p):
        diff = float(np.max(np.abs(np.asarray(got) - np.asarray(ref))))
        assert np.allclose(np.asarray(got), np.asarray(ref),
                           rtol=2e-2, atol=2e-2), "max abs diff %g" % diff
    print("KERNEL_OK")
</pallas_src>

<mosaic_0001>
module attributes {stable_mosaic.version = 11 : i64} {
  func.func @mamba_kernel(%arg0: i32, %arg1: memref<32x32xf32, #tpu.memory_space<vmem>>, %arg2: memref<32x64xf32, #tpu.memory_space<vmem>>, %arg3: memref<32x576xf32, #tpu.memory_space<vmem>>, %arg4: memref<8x256xf32, #tpu.memory_space<vmem>>, %arg5: memref<32x256xf32, #tpu.memory_space<vmem>>, %arg6: memref<16x32xf32, #tpu.memory_space<vmem>>) attributes {dimension_semantics = [#tpu.dimension_semantics<arbitrary>], iteration_bounds = array<i64: 1>, scalar_prefetch = 0 : i64, scratch_operands = 0 : i64, tpu.core_type = #tpu.core_type<tc>, window_params = [{transform_indices = @transform_0, window_bounds = array<i64: 32, 32>}, {pipeline_mode = #tpu.pipeline_mode<synchronous>, transform_indices = @transform_1, window_bounds = array<i64: 32, 64>}, {pipeline_mode = #tpu.pipeline_mode<synchronous>, transform_indices = @transform_2, window_bounds = array<i64: 32, 576>}, {pipeline_mode = #tpu.pipeline_mode<synchronous>, transform_indices = @transform_3, window_bounds = array<i64: 8, 256>}, {pipeline_mode = #tpu.pipeline_mode<synchronous>, transform_indices = @transform_4, window_bounds = array<i64: 32, 256>}, {transform_indices = @transform_5, window_bounds = array<i64: 16, 32>}]} {
    %c0 = arith.constant 0 : index
    %c0_0 = arith.constant 0 : index
    %0 = vector.load %arg1[%c0, %c0_0] : memref<32x32xf32, #tpu.memory_space<vmem>>, vector<32x32xf32>
    %c0_1 = arith.constant 0 : index
    %c0_2 = arith.constant 0 : index
    %1 = vector.load %arg2[%c0_1, %c0_2] : memref<32x64xf32, #tpu.memory_space<vmem>>, vector<32x64xf32>
    %cst = arith.constant dense<0.000000e+00> : vector<32x64xf32>
    %2 = tpu.matmul %0, %1, %cst {dimension_numbers = #tpu.dot_dimension_numbers<[1], [0], [0], [1], [0, 0, 1, 1], [], []>} : vector<32x32xf32>, vector<32x64xf32>, vector<32x64xf32> -> vector<32x64xf32>
    %3 = vector.extract_strided_slice %2 {offsets = [0, 0], sizes = [16, 32], strides = [1, 1]} : vector<32x64xf32> to vector<16x32xf32>
    %4 = vector.extract_strided_slice %2 {offsets = [0, 32], sizes = [16, 32], strides = [1, 1]} : vector<32x64xf32> to vector<16x32xf32>
    %5 = vector.extract_strided_slice %2 {offsets = [16, 0], sizes = [16, 32], strides = [1, 1]} : vector<32x64xf32> to vector<16x32xf32>
    %c0_3 = arith.constant 0 : index
    %c0_4 = arith.constant 0 : index
    %6 = vector.load %arg4[%c0_3, %c0_4] : memref<8x256xf32, #tpu.memory_space<vmem>>, vector<1x32xf32>
    %c1 = arith.constant 1 : index
    %c0_5 = arith.constant 0 : index
    %7 = vector.load %arg4[%c1, %c0_5] : memref<8x256xf32, #tpu.memory_space<vmem>>, vector<1x32xf32>
    %c2 = arith.constant 2 : index
    %c0_6 = arith.constant 0 : index
    %8 = vector.load %arg4[%c2, %c0_6] : memref<8x256xf32, #tpu.memory_space<vmem>>, vector<1x32xf32>
    %9 = vector.broadcast %7 : vector<1x32xf32> to vector<16x32xf32>
    %10 = arith.mulf %3, %9 : vector<16x32xf32>
    %11 = vector.broadcast %6 : vector<1x32xf32> to vector<16x32xf32>
    %12 = arith.mulf %5, %11 : vector<16x32xf32>
    %13 = arith.addf %10, %12 : vector<16x32xf32>
    %14 = vector.broadcast %8 : vector<1x32xf32> to vector<16x32xf32>
    %15 = arith.addf %13, %14 : vector<16x32xf32>
    %16 = arith.negf %15 : vector<16x32xf32>
    %17 = math.exp %16 : vector<16x32xf32>
    %cst_7 = arith.constant 1.000000e+00 : f32
    %18 = vector.broadcast %cst_7 : f32 to vector<16x32xf32>
    %19 = arith.addf %18, %17 : vector<16x32xf32>
    %20 = arith.divf %18, %19 : vector<16x32xf32>
    %21 = arith.mulf %15, %20 : vector<16x32xf32>
    %c0_8 = arith.constant 0 : index
    %c0_9 = arith.constant 0 : index
    %22 = vector.load %arg3[%c0_8, %c0_9] : memref<32x576xf32, #tpu.memory_space<vmem>>, vector<32x576xf32>
    %cst_10 = arith.constant dense<0.000000e+00> : vector<16x576xf32>
    %23 = tpu.matmul %21, %22, %cst_10 {dimension_numbers = #tpu.dot_dimension_numbers<[1], [0], [0], [1], [0, 0, 1, 1], [], []>} : vector<16x32xf32>, vector<32x576xf32>, vector<16x576xf32> -> vector<16x576xf32>
    %24 = vector.extract_strided_slice %23 {offsets = [0, 0], sizes = [16, 256], strides = [1, 1]} : vector<16x576xf32> to vector<16x256xf32>
    %25 = vector.extract_strided_slice %23 {offsets = [0, 256], sizes = [16, 256], strides = [1, 1]} : vector<16x576xf32> to vector<16x256xf32>
    %26 = vector.extract_strided_slice %23 {offsets = [0, 512], sizes = [16, 32], strides = [1, 1]} : vector<16x576xf32> to vector<16x32xf32>
    %c3 = arith.constant 3 : index
    %c0_11 = arith.constant 0 : index
    %27 = vector.load %arg4[%c3, %c0_11] : memref<8x256xf32, #tpu.memory_space<vmem>>, vector<1x32xf32>
    %28 = vector.broadcast %27 : vector<1x32xf32> to vector<16x32xf32>
    %29 = arith.addf %26, %28 : vector<16x32xf32>
    %cst_12 = arith.constant 0.000000e+00 : f32
    %30 = vector.broadcast %cst_12 : f32 to vector<16x32xf32>
    %31 = arith.maximumf %29, %30 : vector<16x32xf32>
    %32 = vector.broadcast %cst_12 : f32 to vector<16x32xf32>
    %33 = arith.subf %29, %32 : vector<16x32xf32>
    %34 = arith.cmpf one, %33, %33 : vector<16x32xf32>
    %35 = vector.broadcast %cst_12 : f32 to vector<16x32xf32>
    %36 = arith.addf %29, %35 : vector<16x32xf32>
    %37 = math.absf %33 : vector<16x32xf32>
    %cst_13 = arith.constant 0.000000e+00 : f32
    %38 = vector.broadcast %cst_13 : f32 to vector<16x32xf32>
    %39 = arith.subf %38, %37 : vector<16x32xf32>
    %40 = math.exp %39 : vector<16x32xf32>
    %41 = math.log1p %40 : vector<16x32xf32>
    %42 = arith.addf %31, %41 : vector<16x32xf32>
    %43 = arith.select %34, %36, %42 : vector<16x32xi1>, vector<16x32xf32>
    %c0_14 = arith.constant 0 : index
    %c0_15 = arith.constant 0 : index
    %44 = vector.load %arg5[%c0_14, %c0_15] : memref<32x256xf32, #tpu.memory_space<vmem>>, vector<32x256xf32>
    %c5 = arith.constant 5 : index
    %c0_16 = arith.constant 0 : index
    %45 = vector.load %arg4[%c5, %c0_16] : memref<8x256xf32, #tpu.memory_space<vmem>>, vector<1x256xf32>
    %46 = math.exp %45 : vector<1x256xf32>
    %cst_17 = arith.constant 0.000000e+00 : f32
    %47 = vector.broadcast %cst_17 : f32 to vector<1x256xf32>
    %48 = arith.subf %47, %46 : vector<1x256xf32>
    %49 = arith.mulf %43, %21 : vector<16x32xf32>
    %50 = tpu.concatenate %43, %49 in 0 : vector<16x32xf32>, vector<16x32xf32> -> vector<32x32xf32>
    %cst_18 = arith.constant dense<0.000000e+00> : vector<32x256xf32>
    %51 = tpu.matmul %50, %44, %cst_18 {dimension_numbers = #tpu.dot_dimension_numbers<[1], [0], [0], [1], [0, 0, 1, 1], [], []>} : vector<32x32xf32>, vector<32x256xf32>, vector<32x256xf32> -> vector<32x256xf32>
    %52 = vector.extract_strided_slice %51 {offsets = [0, 0], sizes = [16, 256], strides = [1, 1]} : vector<32x256xf32> to vector<16x256xf32>
    %53 = vector.broadcast %48 : vector<1x256xf32> to vector<16x256xf32>
    %54 = arith.mulf %52, %53 : vector<16x256xf32>
    %55 = math.exp %54 : vector<16x256xf32>
    %56 = vector.extract_strided_slice %51 {offsets = [16, 0], sizes = [16, 256], strides = [1, 1]} : vector<32x256xf32> to vector<16x256xf32>
    %57 = arith.mulf %56, %24 : vector<16x256xf32>
    %cst_19 = arith.constant 0.000000e+00 : f32
    %58 = vector.broadcast %cst_19 : f32 to vector<2x256xf32>
    %59 = vector.extract_strided_slice %55 {offsets = [0, 0], sizes = [2, 256], strides = [1, 1]} : vector<16x256xf32> to vector<2x256xf32>
    %60 = arith.mulf %59, %58 : vector<2x256xf32>
    %61 = vector.extract_strided_slice %57 {offsets = [0, 0], sizes = [2, 256], strides = [1, 1]} : vector<16x256xf32> to vector<2x256xf32>
    %62 = arith.addf %60, %61 : vector<2x256xf32>
    %63 = vector.extract_strided_slice %25 {offsets = [0, 0], sizes = [2, 256], strides = [1, 1]} : vector<16x256xf32> to vector<2x256xf32>
    %64 = arith.mulf %62, %63 : vector<2x256xf32>
    %cst_20 = arith.constant dense<0.000000e+00> : vector<2x32xf32>
    %65 = tpu.matmul %64, %44, %cst_20 {dimension_numbers = #tpu.dot_dimension_numbers<[1], [1], [0], [0], [0, 0, 1, 0], [], []>} : vector<2x256xf32>, vector<32x256xf32>, vector<2x32xf32> -> vector<2x32xf32>
    %66 = vector.extract_strided_slice %55 {offsets = [2, 0], sizes = [2, 256], strides = [1, 1]} : vector<16x256xf32> to vector<2x256xf32>
    %67 = arith.mulf %66, %62 : vector<2x256xf32>
    %68 = vector.extract_strided_slice %57 {offsets = [2, 0], sizes = [2, 256], strides = [1, 1]} : vector<16x256xf32> to vector<2x256xf32>
    %69 = arith.addf %67, %68 : vector<2x256xf32>
    %70 = vector.extract_strided_slice %25 {offsets = [2, 0], sizes = [2, 256], strides = [1, 1]} : vector<16x256xf32> to vector<2x256xf32>
    %71 = arith.mulf %69, %70 : vector<2x256xf32>
    %cst_21 = arith.constant dense<0.000000e+00> : vector<2x32xf32>
    %72 = tpu.matmul %71, %44, %cst_21 {dimension_numbers = #tpu.dot_dimension_numbers<[1], [1], [0], [0], [0, 0, 1, 0], [], []>} : vector<2x256xf32>, vector<32x256xf32>, vector<2x32xf32> -> vector<2x32xf32>
    %73 = vector.extract_strided_slice %55 {offsets = [4, 0], sizes = [2, 256], strides = [1, 1]} : vector<16x256xf32> to vector<2x256xf32>
    %74 = arith.mulf %73, %69 : vector<2x256xf32>
    %75 = vector.extract_strided_slice %57 {offsets = [4, 0], sizes = [2, 256], strides = [1, 1]} : vector<16x256xf32> to vector<2x256xf32>
    %76 = arith.addf %74, %75 : vector<2x256xf32>
    %77 = vector.extract_strided_slice %25 {offsets = [4, 0], sizes = [2, 256], strides = [1, 1]} : vector<16x256xf32> to vector<2x256xf32>
    %78 = arith.mulf %76, %77 : vector<2x256xf32>
    %cst_22 = arith.constant dense<0.000000e+00> : vector<2x32xf32>
    %79 = tpu.matmul %78, %44, %cst_22 {dimension_numbers = #tpu.dot_dimension_numbers<[1], [1], [0], [0], [0, 0, 1, 0], [], []>} : vector<2x256xf32>, vector<32x256xf32>, vector<2x32xf32> -> vector<2x32xf32>
    %80 = vector.extract_strided_slice %55 {offsets = [6, 0], sizes = [2, 256], strides = [1, 1]} : vector<16x256xf32> to vector<2x256xf32>
    %81 = arith.mulf %80, %76 : vector<2x256xf32>
    %82 = vector.extract_strided_slice %57 {offsets = [6, 0], sizes = [2, 256], strides = [1, 1]} : vector<16x256xf32> to vector<2x256xf32>
    %83 = arith.addf %81, %82 : vector<2x256xf32>
    %84 = vector.extract_strided_slice %25 {offsets = [6, 0], sizes = [2, 256], strides = [1, 1]} : vector<16x256xf32> to vector<2x256xf32>
    %85 = arith.mulf %83, %84 : vector<2x256xf32>
    %cst_23 = arith.constant dense<0.000000e+00> : vector<2x32xf32>
    %86 = tpu.matmul %85, %44, %cst_23 {dimension_numbers = #tpu.dot_dimension_numbers<[1], [1], [0], [0], [0, 0, 1, 0], [], []>} : vector<2x256xf32>, vector<32x256xf32>, vector<2x32xf32> -> vector<2x32xf32>
    %87 = vector.extract_strided_slice %55 {offsets = [8, 0], sizes = [2, 256], strides = [1, 1]} : vector<16x256xf32> to vector<2x256xf32>
    %88 = arith.mulf %87, %83 : vector<2x256xf32>
    %89 = vector.extract_strided_slice %57 {offsets = [8, 0], sizes = [2, 256], strides = [1, 1]} : vector<16x256xf32> to vector<2x256xf32>
    %90 = arith.addf %88, %89 : vector<2x256xf32>
    %91 = vector.extract_strided_slice %25 {offsets = [8, 0], sizes = [2, 256], strides = [1, 1]} : vector<16x256xf32> to vector<2x256xf32>
    %92 = arith.mulf %90, %91 : vector<2x256xf32>
    %cst_24 = arith.constant dense<0.000000e+00> : vector<2x32xf32>
    %93 = tpu.matmul %92, %44, %cst_24 {dimension_numbers = #tpu.dot_dimension_numbers<[1], [1], [0], [0], [0, 0, 1, 0], [], []>} : vector<2x256xf32>, vector<32x256xf32>, vector<2x32xf32> -> vector<2x32xf32>
    %94 = vector.extract_strided_slice %55 {offsets = [10, 0], sizes = [2, 256], strides = [1, 1]} : vector<16x256xf32> to vector<2x256xf32>
    %95 = arith.mulf %94, %90 : vector<2x256xf32>
    %96 = vector.extract_strided_slice %57 {offsets = [10, 0], sizes = [2, 256], strides = [1, 1]} : vector<16x256xf32> to vector<2x256xf32>
    %97 = arith.addf %95, %96 : vector<2x256xf32>
    %98 = vector.extract_strided_slice %25 {offsets = [10, 0], sizes = [2, 256], strides = [1, 1]} : vector<16x256xf32> to vector<2x256xf32>
    %99 = arith.mulf %97, %98 : vector<2x256xf32>
    %cst_25 = arith.constant dense<0.000000e+00> : vector<2x32xf32>
    %100 = tpu.matmul %99, %44, %cst_25 {dimension_numbers = #tpu.dot_dimension_numbers<[1], [1], [0], [0], [0, 0, 1, 0], [], []>} : vector<2x256xf32>, vector<32x256xf32>, vector<2x32xf32> -> vector<2x32xf32>
    %101 = vector.extract_strided_slice %55 {offsets = [12, 0], sizes = [2, 256], strides = [1, 1]} : vector<16x256xf32> to vector<2x256xf32>
    %102 = arith.mulf %101, %97 : vector<2x256xf32>
    %103 = vector.extract_strided_slice %57 {offsets = [12, 0], sizes = [2, 256], strides = [1, 1]} : vector<16x256xf32> to vector<2x256xf32>
    %104 = arith.addf %102, %103 : vector<2x256xf32>
    %105 = vector.extract_strided_slice %25 {offsets = [12, 0], sizes = [2, 256], strides = [1, 1]} : vector<16x256xf32> to vector<2x256xf32>
    %106 = arith.mulf %104, %105 : vector<2x256xf32>
    %cst_26 = arith.constant dense<0.000000e+00> : vector<2x32xf32>
    %107 = tpu.matmul %106, %44, %cst_26 {dimension_numbers = #tpu.dot_dimension_numbers<[1], [1], [0], [0], [0, 0, 1, 0], [], []>} : vector<2x256xf32>, vector<32x256xf32>, vector<2x32xf32> -> vector<2x32xf32>
    %108 = vector.extract_strided_slice %55 {offsets = [14, 0], sizes = [2, 256], strides = [1, 1]} : vector<16x256xf32> to vector<2x256xf32>
    %109 = arith.mulf %108, %104 : vector<2x256xf32>
    %110 = vector.extract_strided_slice %57 {offsets = [14, 0], sizes = [2, 256], strides = [1, 1]} : vector<16x256xf32> to vector<2x256xf32>
    %111 = arith.addf %109, %110 : vector<2x256xf32>
    %112 = vector.extract_strided_slice %25 {offsets = [14, 0], sizes = [2, 256], strides = [1, 1]} : vector<16x256xf32> to vector<2x256xf32>
    %113 = arith.mulf %111, %112 : vector<2x256xf32>
    %cst_27 = arith.constant dense<0.000000e+00> : vector<2x32xf32>
    %114 = tpu.matmul %113, %44, %cst_27 {dimension_numbers = #tpu.dot_dimension_numbers<[1], [1], [0], [0], [0, 0, 1, 0], [], []>} : vector<2x256xf32>, vector<32x256xf32>, vector<2x32xf32> -> vector<2x32xf32>
    %115 = tpu.concatenate %65, %72, %79, %86, %93, %100, %107, %114 in 0 : vector<2x32xf32>, vector<2x32xf32>, vector<2x32xf32>, vector<2x32xf32>, vector<2x32xf32>, vector<2x32xf32>, vector<2x32xf32>, vector<2x32xf32> -> vector<16x32xf32>
    %c4 = arith.constant 4 : index
    %c0_28 = arith.constant 0 : index
    %116 = vector.load %arg4[%c4, %c0_28] : memref<8x256xf32, #tpu.memory_space<vmem>>, vector<1x32xf32>
    %117 = vector.broadcast %116 : vector<1x32xf32> to vector<16x32xf32>
    %118 = arith.mulf %21, %117 : vector<16x32xf32>
    %119 = arith.addf %115, %118 : vector<16x32xf32>
    %120 = arith.negf %4 : vector<16x32xf32>
    %121 = math.exp %120 : vector<16x32xf32>
    %cst_29 = arith.constant 1.000000e+00 : f32
    %122 = vector.broadcast %cst_29 : f32 to vector<16x32xf32>
    %123 = arith.addf %122, %121 : vector<16x32xf32>
    %124 = arith.divf %122, %123 : vector<16x32xf32>
    %125 = arith.mulf %4, %124 : vector<16x32xf32>
    %126 = arith.mulf %119, %125 : vector<16x32xf32>
    %c0_30 = arith.constant 0 : index
    %c544 = arith.constant 544 : index
    %127 = vector.load %arg3[%c0_30, %c544] : memref<32x576xf32, #tpu.memory_space<vmem>>, vector<32x32xf32>
    %cst_31 = arith.constant dense<0.000000e+00> : vector<16x32xf32>
    %128 = tpu.matmul %126, %127, %cst_31 {dimension_numbers = #tpu.dot_dimension_numbers<[1], [0], [0], [1], [0, 0, 1, 1], [], []>} : vector<16x32xf32>, vector<32x32xf32>, vector<16x32xf32> -> vector<16x32xf32>
    %c0_32 = arith.constant 0 : index
    %c0_33 = arith.constant 0 : index
    %129 = vector.load %arg6[%c0_32, %c0_33] : memref<16x32xf32, #tpu.memory_space<vmem>>, vector<16x32xf32>
    tpu.vector_store %arg6[%c0_32, %c0_33], %128 {strides = array<i32>} : memref<16x32xf32, #tpu.memory_space<vmem>>, vector<16x32xf32>,
    return
  }
  func.func @transform_0(%arg0: i32) -> (i32, i32) {
    %c0_i32 = arith.constant 0 : i32
    %c0_i32_0 = arith.constant 0 : i32
    return %arg0, %c0_i32 : i32, i32
  }
  func.func @transform_1(%arg0: i32) -> (i32, i32) {
    %c0_i32 = arith.constant 0 : i32
    %c0_i32_0 = arith.constant 0 : i32
    %c0_i32_1 = arith.constant 0 : i32
    return %c0_i32, %c0_i32_0 : i32, i32
  }
  func.func @transform_2(%arg0: i32) -> (i32, i32) {
    %c0_i32 = arith.constant 0 : i32
    %c0_i32_0 = arith.constant 0 : i32
    %c0_i32_1 = arith.constant 0 : i32
    return %c0_i32, %c0_i32_0 : i32, i32
  }
  func.func @transform_3(%arg0: i32) -> (i32, i32) {
    %c0_i32 = arith.constant 0 : i32
    %c0_i32_0 = arith.constant 0 : i32
    %c0_i32_1 = arith.constant 0 : i32
    return %c0_i32, %c0_i32_0 : i32, i32
  }
  func.func @transform_4(%arg0: i32) -> (i32, i32) {
    %c0_i32 = arith.constant 0 : i32
    %c0_i32_0 = arith.constant 0 : i32
    %c0_i32_1 = arith.constant 0 : i32
    return %c0_i32, %c0_i32_0 : i32, i32
  }
  func.func @transform_5(%arg0: i32) -> (i32, i32) {
    %c0_i32 = arith.constant 0 : i32
    %c0_i32_0 = arith.constant 0 : i32
    return %arg0, %c0_i32 : i32, i32
  }
}

</mosaic_0001>

<llo_original>
// kernel: mamba_forward.1
$region0: #{mamba_forward.1}
  #allocation0 [shape = 'u32[]', space=smem, size = 0x4, offset = 0x4, fixed_abs, tag = 'smem constant byte address 0x4 - core index']
  #allocation1 [shape = 'u32[144,128]{1,0:T(1,128)}', space=vmem, size = 0x12000, scoped, tag = 'internal scratch']
  %s0 = inlined_call_operand.vmem [shape: f32[32,32], index: 0, kind: input, shape index: {}]
  %s1 = inlined_call_operand.vmem [shape: f32[32,64], index: 1, kind: input, shape index: {}]
  %s2 = inlined_call_operand.vmem [shape: f32[32,576], index: 2, kind: input, shape index: {}]
  %s3 = inlined_call_operand.vmem [shape: f32[8,256], index: 3, kind: input, shape index: {}]
  %s4 = inlined_call_operand.vmem [shape: f32[32,256], index: 4, kind: input, shape index: {}]
  %s5 = inlined_call_operand.vmem [shape: f32[16,32], index: 5, kind: output, shape index: {}]
  %s6 = sld [smem:[#allocation0]]
  $region30: #{mamba_forward.1} parent=0
    _
  %s8 = ssub.s32 1, %s6
  %s9 = scalar_select 0, %s8, %s6
  // Predicated region
  $region2: #{mamba_forward.1} parent=0 // pred_check
    _
  $region3: #{mamba_forward.1} parent=0 // pred_check_branch
    %11 = sbr.rel (0) target = $region5
  $region4: #{mamba_forward.1} parent=0 // pred_region
    _
  $region5: #{mamba_forward.1} parent=0 // pred_fallthru
    _
  // Predicated region
  $region6: #{mamba_forward.1} parent=0 // pred_check
    _
  $region7: #{mamba_forward.1} parent=0 // pred_check_branch
    %13 = sbr.rel (0) target = $region9
  $region8: #{mamba_forward.1} parent=0 // pred_region
    _
  $region9: #{mamba_forward.1} parent=0 // pred_fallthru
    _
  // Predicated region
  $region10: #{mamba_forward.1} parent=0 // pred_check
    _
  $region11: #{mamba_forward.1} parent=0 // pred_check_branch
    %15 = sbr.rel (0) target = $region13
  $region12: #{mamba_forward.1} parent=0 // pred_region
    _
  $region13: #{mamba_forward.1} parent=0 // pred_fallthru
    _
  // Predicated region
  $region14: #{mamba_forward.1} parent=0 // pred_check
    _
  $region15: #{mamba_forward.1} parent=0 // pred_check_branch
    %17 = sbr.rel (0) target = $region17
  $region16: #{mamba_forward.1} parent=0 // pred_region
    _
  $region17: #{mamba_forward.1} parent=0 // pred_fallthru
    _
  // Predicated region
  $region18: #{mamba_forward.1} parent=0 // pred_check
    _
  $region19: #{mamba_forward.1} parent=0 // pred_check_branch
    %19 = sbr.rel (0) target = $region21
  $region20: #{mamba_forward.1} parent=0 // pred_region
    _
  $region21: #{mamba_forward.1} parent=0 // pred_fallthru
    _
  %v20 = vld [vmem:[%s0] sm:$0xff]
  %v21 = vld [vmem:[%s0 + $0x8] sm:$0xff]
  %v22 = vld [vmem:[%s0 + $0x10] sm:$0xff]
  %v23 = vld [vmem:[%s0 + $0x18] sm:$0xff]
  %v24 = vld [vmem:[%s1] sm:$0xff]
  %v25 = vld [vmem:[%s1 + $0x8] sm:$0xff]
  %v26 = vld [vmem:[%s1 + $0x10] sm:$0xff]
  %v27 = vld [vmem:[%s1 + $0x18] sm:$0xff]
  %vm28 = vcmask 261120
  %v30 = vsel %vm28, %v20, 0
  %v33 = vsel %vm28, %v21, 0
  %v36 = vsel %vm28, %v22, 0
  %v39 = vsel %vm28, %v23, 0
  %41 = vmatprep.subr.mxu0 0.0
  %42 = vmatpush1.msra.mxu0 0.0
  %43 = vmatprep.subr.mxu0 0.0
  %44 = vmatpush1.msra.mxu0 0.0
  %45 = vmatprep.subr.mxu0 0.0
  %46 = vmatpush1.msra.mxu0 0.0
  %47 = vmatprep.subr.mxu0 0.0
  %48 = vmatpush1.msra.mxu0 0.0
  %49 = vmatprep.subr.mxu0 0.0
  %50 = vmatpush1.msra.mxu0 0.0
  %51 = vmatprep.subr.mxu0 0.0
  %52 = vmatpush1.msra.mxu0 0.0
  %53 = vmatprep.subr.mxu0 0.0
  %54 = vmatpush1.msra.mxu0 0.0
  %55 = vmatprep.subr.mxu0 0.0
  %56 = vmatpush1.msra.mxu0 0.0
  %57 = vmatprep.subr.mxu0 0.0
  %58 = vmatpush1.msra.mxu0 0.0
  %59 = vmatprep.subr.mxu0 0.0
  %60 = vmatpush1.msra.mxu0 0.0
  %61 = vmatprep.subr.mxu0 0.0
  %62 = vmatpush1.msra.mxu0 0.0
  %63 = vmatprep.subr.mxu0 0.0
  %64 = vmatpush1.msra.mxu0 0.0
  %65 = vmatprep.subr.mxu0 0.0
  %66 = vmatpush1.msra.mxu0 %v27
  %67 = vmatprep.subr.mxu0 0.0
  %68 = vmatpush1.msra.mxu0 %v26
  %69 = vmatprep.subr.mxu0 0.0
  %70 = vmatpush1.msra.mxu0 %v25
  %71 = vmatprep.subr.mxu0 0.0
  %72 = vmatpush1.msra.mxu0 %v24
  %73 = vmatprep.subr.mxu0 0.0
  %74 = vmatpush2.msra.mxu0 0.0
  %75 = vmatprep.subr.mxu0 0.0
  %76 = vmatpush2.msra.mxu0 0.0
  %77 = vmatprep.subr.mxu0 0.0
  %78 = vmatpush2.msra.mxu0 0.0
  %79 = vmatprep.subr.mxu0 0.0
  %80 = vmatpush2.msra.mxu0 0.0
  %81 = vmatprep.subr.mxu0 0.0
  %82 = vmatpush2.msra.mxu0 0.0
  %83 = vmatprep.subr.mxu0 0.0
  %84 = vmatpush2.msra.mxu0 0.0
  %85 = vmatprep.subr.mxu0 0.0
  %86 = vmatpush2.msra.mxu0 0.0
  %87 = vmatprep.subr.mxu0 0.0
  %88 = vmatpush2.msra.mxu0 0.0
  %89 = vmatprep.subr.mxu0 0.0
  %90 = vmatpush2.msra.mxu0 0.0
  %91 = vmatprep.subr.mxu0 0.0
  %92 = vmatpush2.msra.mxu0 0.0
  %93 = vmatprep.subr.mxu0 0.0
  %94 = vmatpush2.msra.mxu0 0.0
  %95 = vmatprep.subr.mxu0 0.0
  %96 = vmatpush2.msra.mxu0 0.0
  %97 = vmatprep.subr.mxu0 0.0
  %98 = vmatpush2.msra.mxu0 0.0
  %99 = vmatprep.subr.mxu0 0.0
  %100 = vmatpush2.msra.mxu0 0.0
  %101 = vmatprep.subr.mxu0 0.0
  %102 = vmatpush2.msra.mxu0 0.0
  %103 = vmatprep.subr.mxu0 0.0
  %104 = vmatpush2.msra.mxu0 0.0
  %105 = vmatprep.mubr.f32.mxu0 0.0
  %106 = vmatmul.mubr.f32.gmra.mxu0 %v30
  %v107 = vpop.f32.mrf.mxu0
  %v108 = vadd.f32 0.0, %v107
  %v109 = vpop.f32.mrf.mxu0
  %110 = vmatprep.mubr.f32.mxu0 0.0
  %111 = vmatmul.mubr.f32.gmra.mxu0 %v33
  %v112 = vpop.f32.mrf.mxu0
  %v113 = vadd.f32 0.0, %v112
  %v114 = vpop.f32.mrf.mxu0
  %115 = vmatprep.mubr.f32.mxu0 0.0
  %116 = vmatmul.mubr.f32.gmra.mxu0 %v36
  %v117 = vpop.f32.mrf.mxu0
  %v118 = vadd.f32 0.0, %v117
  %v119 = vpop.f32.mrf.mxu0
  %120 = vmatprep.mubr.f32.mxu0 0.0
  %121 = vmatmul.mubr.f32.gmra.mxu0 %v39
  %v122 = vpop.f32.mrf.mxu0
  %v123 = vadd.f32 0.0, %v122
  %v124 = vpop.f32.mrf.mxu0
  %125 = vdwg.mxu0
  %v126 = vld [vmem:[%s3] ss:$0 sm:$0xff]
  %v127 = vld [vmem:[%s3 + $0x1] ss:$0 sm:$0xff]
  %v128 = vld [vmem:[%s3 + $0x2] ss:$0 sm:$0xff]
  %v129 = vmul.f32 %v108, %v127
  %v130 = vmul.f32 %v113, %v127
  %v131 = vmul.f32 %v118, %v126
  %v132 = vmul.f32 %v123, %v126
  %v133 = vadd.f32 %v129, %v131
  %v134 = vadd.f32 %v130, %v132
  %v135 = vadd.f32 %v133, %v128
  %v136 = vadd.f32 %v134, %v128
  %v137 = vxor.u32 %v135, 2147483648
  %v138 = vxor.u32 %v136, 2147483648
  %v139 = vmul.f32 %v137, 1.442695
  %v140 = vpow.pop %v139
  %v141 = vmul.f32 %v138, 1.442695
  %v142 = vpow.pop %v141
  %v143 = vadd.f32 %v140, 1.0
  %v144 = vadd.f32 %v142, 1.0
  %v145 = vrcp.pop %v143
  %v146 = vmul.f32 1.0, %v145
  %v147 = vrcp.pop %v144
  %v148 = vmul.f32 1.0, %v147
  %v149 = vmul.f32 %v135, %v146
  %v150 = vmul.f32 %v136, %v148
  %v151 = vld [vmem:[%s2] sm:$0xff]
  %v152 = vld [vmem:[%s2 + $0x8] sm:$0xff]
  %v153 = vld [vmem:[%s2 + $0x10] sm:$0xff]
  %v154 = vld [vmem:[%s2 + $0x18] sm:$0xff]
  %v155 = vld [vmem:[%s2 + $0x20] sm:$0xff]
  %v156 = vld [vmem:[%s2 + $0x28] sm:$0xff]
  %v157 = vld [vmem:[%s2 + $0x30] sm:$0xff]
  %v158 = vld [vmem:[%s2 + $0x38] sm:$0xff]
  %v159 = vld [vmem:[%s2 + $0x40] sm:$0xff]
  %v160 = vld [vmem:[%s2 + $0x48] sm:$0xff]
  %v161 = vld [vmem:[%s2 + $0x50] sm:$0xff]
  %v162 = vld [vmem:[%s2 + $0x58] sm:$0xff]
  %v163 = vld [vmem:[%s2 + $0x60] sm:$0xff]
  %v164 = vld [vmem:[%s2 + $0x68] sm:$0xff]
  %v165 = vld [vmem:[%s2 + $0x70] sm:$0xff]
  %v166 = vld [vmem:[%s2 + $0x78] sm:$0xff]
  %v167 = vld [vmem:[%s2 + $0x80] sm:$0xff]
  %v168 = vld [vmem:[%s2 + $0x88] sm:$0xff]
  %v169 = vld [vmem:[%s2 + $0x90] sm:$0xff]
  %v170 = vld [vmem:[%s2 + $0x98] sm:$0xff]
  %v172 = vsel %vm28, %v149, 0
  %v175 = vsel %vm28, %v150, 0
  %177 = vmatprep.subr.mxu0 0.0
  %178 = vmatpush1.msra.mxu0 0.0
  %179 = vmatprep.subr.mxu0 0.0
  %180 = vmatpush1.msra.mxu0 0.0
  %181 = vmatprep.subr.mxu0 0.0
  %182 = vmatpush1.msra.mxu0 0.0
  %183 = vmatprep.subr.mxu0 0.0
  %184 = vmatpush1.msra.mxu0 0.0
  %185 = vmatprep.subr.mxu0 0.0
  %186 = vmatpush1.msra.mxu0 0.0
  %187 = vmatprep.subr.mxu0 0.0
  %188 = vmatpush1.msra.mxu0 0.0
  %189 = vmatprep.subr.mxu0 0.0
  %190 = vmatpush1.msra.mxu0 0.0
  %191 = vmatprep.subr.mxu0 0.0
  %192 = vmatpush1.msra.mxu0 0.0
  %193 = vmatprep.subr.mxu0 0.0
  %194 = vmatpush1.msra.mxu0 0.0
  %195 = vmatprep.subr.mxu0 0.0
  %196 = vmatpush1.msra.mxu0 0.0
  %197 = vmatprep.subr.mxu0 0.0
  %198 = vmatpush1.msra.mxu0 0.0
  %199 = vmatprep.subr.mxu0 0.0
  %200 = vmatpush1.msra.mxu0 0.0
  %201 = vmatprep.subr.mxu0 %v167
  %202 = vmatpush1.msra.mxu0 %v166
  %203 = vmatprep.subr.mxu0 %v162
  %204 = vmatpush1.msra.mxu0 %v161
  %205 = vmatprep.subr.mxu0 %v157
  %206 = vmatpush1.msra.mxu0 %v156
  %207 = vmatprep.subr.mxu0 %v152
  %208 = vmatpush1.msra.mxu0 %v151
  %209 = vmatprep.subr.mxu0 0.0
  %210 = vmatpush2.msra.mxu0 0.0
  %211 = vmatprep.subr.mxu0 0.0
  %212 = vmatpush2.msra.mxu0 0.0
  %213 = vmatprep.subr.mxu0 0.0
  %214 = vmatpush2.msra.mxu0 0.0
  %215 = vmatprep.subr.mxu0 0.0
  %216 = vmatpush2.msra.mxu0 0.0
  %217 = vmatprep.subr.mxu0 0.0
  %218 = vmatpush2.msra.mxu0 0.0
  %219 = vmatprep.subr.mxu0 0.0
  %220 = vmatpush2.msra.mxu0 0.0
  %221 = vmatprep.subr.mxu0 0.0
  %222 = vmatpush2.msra.mxu0 0.0
  %223 = vmatprep.subr.mxu0 0.0
  %224 = vmatpush2.msra.mxu0 0.0
  %225 = vmatprep.subr.mxu0 0.0
  %226 = vmatpush2.msra.mxu0 0.0
  %227 = vmatprep.subr.mxu0 0.0
  %228 = vmatpush2.msra.mxu0 0.0
  %229 = vmatprep.subr.mxu0 0.0
  %230 = vmatpush2.msra.mxu0 0.0
  %231 = vmatprep.subr.mxu0 0.0
  %232 = vmatpush2.msra.mxu0 0.0
  %233 = vmatprep.subr.mxu0 0.0
  %234 = vmatpush2.msra.mxu0 0.0
  %235 = vmatprep.subr.mxu0 0.0
  %236 = vmatpush2.msra.mxu0 0.0
  %237 = vmatprep.subr.mxu0 0.0
  %238 = vmatpush2.msra.mxu0 0.0
  %239 = vmatprep.subr.mxu0 0.0
  %240 = vmatpush2.msra.mxu0 0.0
  %241 = vmatprep.mubr.f32.mxu0 0.0
  %242 = vmatmul.mubr.f32.gmra.mxu0 %v172
  %v243 = vpop.f32.mrf.mxu0
  %v244 = vadd.f32 0.0, %v243
  %v245 = vpop.f32.mrf.mxu0
  %v246 = vadd.f32 0.0, %v245
  %247 = vmatprep.mubr.f32.mxu0 0.0
  %248 = vmatmul.mubr.f32.gmra.mxu0 %v175
  %v249 = vpop.f32.mrf.mxu0
  %v250 = vadd.f32 0.0, %v249
  %v251 = vpop.f32.mrf.mxu0
  %v252 = vadd.f32 0.0, %v251
  %253 = vdwg.mxu0
  %254 = vmatprep.subr.mxu0 0.0
  %255 = vmatpush1.msra.mxu0 0.0
  %256 = vmatprep.subr.mxu0 0.0
  %257 = vmatpush1.msra.mxu0 0.0
  %258 = vmatprep.subr.mxu0 0.0
  %259 = vmatpush1.msra.mxu0 0.0
  %260 = vmatprep.subr.mxu0 0.0
  %261 = vmatpush1.msra.mxu0 0.0
  %262 = vmatprep.subr.mxu0 0.0
  %263 = vmatpush1.msra.mxu0 0.0
  %264 = vmatprep.subr.mxu0 0.0
  %265 = vmatpush1.msra.mxu0 0.0
  %266 = vmatprep.subr.mxu0 0.0
  %267 = vmatpush1.msra.mxu0 0.0
  %268 = vmatprep.subr.mxu0 0.0
  %269 = vmatpush1.msra.mxu0 0.0
  %270 = vmatprep.subr.mxu0 0.0
  %271 = vmatpush1.msra.mxu0 0.0
  %272 = vmatprep.subr.mxu0 0.0
  %273 = vmatpush1.msra.mxu0 0.0
  %274 = vmatprep.subr.mxu0 0.0
  %275 = vmatpush1.msra.mxu0 0.0
  %276 = vmatprep.subr.mxu0 0.0
  %277 = vmatpush1.msra.mxu0 0.0
  %278 = vmatprep.subr.mxu0 %v169
  %279 = vmatpush1.msra.mxu0 %v168
  %280 = vmatprep.subr.mxu0 %v164
  %281 = vmatpush1.msra.mxu0 %v163
  %282 = vmatprep.subr.mxu0 %v159
  %283 = vmatpush1.msra.mxu0 %v158
  %284 = vmatprep.subr.mxu0 %v154
  %285 = vmatpush1.msra.mxu0 %v153
  %286 = vmatprep.subr.mxu0 0.0
  %287 = vmatpush2.msra.mxu0 0.0
  %288 = vmatprep.subr.mxu0 0.0
  %289 = vmatpush2.msra.mxu0 0.0
  %290 = vmatprep.subr.mxu0 0.0
  %291 = vmatpush2.msra.mxu0 0.0
  %292 = vmatprep.subr.mxu0 0.0
  %293 = vmatpush2.msra.mxu0 0.0
  %294 = vmatprep.subr.mxu0 0.0
  %295 = vmatpush2.msra.mxu0 0.0
  %296 = vmatprep.subr.mxu0 0.0
  %297 = vmatpush2.msra.mxu0 0.0
  %298 = vmatprep.subr.mxu0 0.0
  %299 = vmatpush2.msra.mxu0 0.0
  %300 = vmatprep.subr.mxu0 0.0
  %301 = vmatpush2.msra.mxu0 0.0
  %302 = vmatprep.subr.mxu0 0.0
  %303 = vmatpush2.msra.mxu0 0.0
  %304 = vmatprep.subr.mxu0 0.0
  %305 = vmatpush2.msra.mxu0 0.0
  %306 = vmatprep.subr.mxu0 0.0
  %307 = vmatpush2.msra.mxu0 0.0
  %308 = vmatprep.subr.mxu0 0.0
  %309 = vmatpush2.msra.mxu0 0.0
  %310 = vmatprep.subr.mxu0 0.0
  %311 = vmatpush2.msra.mxu0 0.0
  %312 = vmatprep.subr.mxu0 0.0
  %313 = vmatpush2.msra.mxu0 0.0
  %314 = vmatprep.subr.mxu0 0.0
  %315 = vmatpush2.msra.mxu0 0.0
  %316 = vmatprep.subr.mxu0 0.0
  %317 = vmatpush2.msra.mxu0 0.0
  %318 = vmatprep.mubr.f32.mxu0 0.0
  %319 = vmatmul.mubr.f32.gmra.mxu0 %v172
  %v320 = vpop.f32.mrf.mxu0
  %v321 = vadd.f32 0.0, %v320
  %v322 = vpop.f32.mrf.mxu0
  %v323 = vadd.f32 0.0, %v322
  %324 = vmatprep.mubr.f32.mxu0 0.0
  %325 = vmatmul.mubr.f32.gmra.mxu0 %v175
  %v326 = vpop.f32.mrf.mxu0
  %v327 = vadd.f32 0.0, %v326
  %v328 = vpop.f32.mrf.mxu0
  %v329 = vadd.f32 0.0, %v328
  %330 = vdwg.mxu0
  %331 = vmatprep.subr.mxu0 0.0
  %332 = vmatpush1.msra.mxu0 0.0
  %333 = vmatprep.subr.mxu0 0.0
  %334 = vmatpush1.msra.mxu0 0.0
  %335 = vmatprep.subr.mxu0 0.0
  %336 = vmatpush1.msra.mxu0 0.0
  %337 = vmatprep.subr.mxu0 0.0
  %338 = vmatpush1.msra.mxu0 0.0
  %339 = vmatprep.subr.mxu0 0.0
  %340 = vmatpush1.msra.mxu0 0.0
  %341 = vmatprep.subr.mxu0 0.0
  %342 = vmatpush1.msra.mxu0 0.0
  %343 = vmatprep.subr.mxu0 0.0
  %344 = vmatpush1.msra.mxu0 0.0
  %345 = vmatprep.subr.mxu0 0.0
  %346 = vmatpush1.msra.mxu0 0.0
  %347 = vmatprep.subr.mxu0 0.0
  %348 = vmatpush1.msra.mxu0 0.0
  %349 = vmatprep.subr.mxu0 0.0
  %350 = vmatpush1.msra.mxu0 0.0
  %351 = vmatprep.subr.mxu0 0.0
  %352 = vmatpush1.msra.mxu0 0.0
  %353 = vmatprep.subr.mxu0 0.0
  %354 = vmatpush1.msra.mxu0 0.0
  %355 = vmatprep.subr.mxu0 0.0
  %356 = vmatpush1.msra.mxu0 %v170
  %357 = vmatprep.subr.mxu0 0.0
  %358 = vmatpush1.msra.mxu0 %v165
  %359 = vmatprep.subr.mxu0 0.0
  %360 = vmatpush1.msra.mxu0 %v160
  %361 = vmatprep.subr.mxu0 0.0
  %362 = vmatpush1.msra.mxu0 %v155
  %363 = vmatprep.subr.mxu0 0.0
  %364 = vmatpush2.msra.mxu0 0.0
  %365 = vmatprep.subr.mxu0 0.0
  %366 = vmatpush2.msra.mxu0 0.0
  %367 = vmatprep.subr.mxu0 0.0
  %368 = vmatpush2.msra.mxu0 0.0
  %369 = vmatprep.subr.mxu0 0.0
  %370 = vmatpush2.msra.mxu0 0.0
  %371 = vmatprep.subr.mxu0 0.0
  %372 = vmatpush2.msra.mxu0 0.0
  %373 = vmatprep.subr.mxu0 0.0
  %374 = vmatpush2.msra.mxu0 0.0
  %375 = vmatprep.subr.mxu0 0.0
  %376 = vmatpush2.msra.mxu0 0.0
  %377 = vmatprep.subr.mxu0 0.0
  %378 = vmatpush2.msra.mxu0 0.0
  %379 = vmatprep.subr.mxu0 0.0
  %380 = vmatpush2.msra.mxu0 0.0
  %381 = vmatprep.subr.mxu0 0.0
  %382 = vmatpush2.msra.mxu0 0.0
  %383 = vmatprep.subr.mxu0 0.0
  %384 = vmatpush2.msra.mxu0 0.0
  %385 = vmatprep.subr.mxu0 0.0
  %386 = vmatpush2.msra.mxu0 0.0
  %387 = vmatprep.subr.mxu0 0.0
  %388 = vmatpush2.msra.mxu0 0.0
  %389 = vmatprep.subr.mxu0 0.0
  %390 = vmatpush2.msra.mxu0 0.0
  %391 = vmatprep.subr.mxu0 0.0
  %392 = vmatpush2.msra.mxu0 0.0
  %393 = vmatprep.subr.mxu0 0.0
  %394 = vmatpush2.msra.mxu0 0.0
  %395 = vmatprep.mubr.f32.mxu0 0.0
  %396 = vmatmul.mubr.f32.gmra.mxu0 %v172
  %v397 = vpop.f32.mrf.mxu0
  %v398 = vadd.f32 0.0, %v397
  %v399 = vpop.f32.mrf.mxu0
  %400 = vmatprep.mubr.f32.mxu0 0.0
  %401 = vmatmul.mubr.f32.gmra.mxu0 %v175
  %v402 = vpop.f32.mrf.mxu0
  %v403 = vadd.f32 0.0, %v402
  %v404 = vpop.f32.mrf.mxu0
  %405 = vdwg.mxu0
  %v406 = vld [vmem:[%s3 + $0x3] ss:$0 sm:$0xff]
  %v407 = vadd.f32 %v398, %v406
  %v408 = vadd.f32 %v403, %v406
  %v409 = vmax.f32 %v407, 0.0
  %v410 = vmax.f32 %v408, 0.0
  %vm411 = vcmp.ne.f32.partialorder %v407, %v407
  %vm412 = vcmp.ne.f32.partialorder %v408, %v408
  %v413 = vadd.f32 %v407, 0.0
  %v414 = vadd.f32 %v408, 0.0
  %v415 = vand.u32 2147483647, %v407
  %v416 = vand.u32 2147483647, %v408
  %v417 = vsub.f32 0.0, %v415
  %v418 = vsub.f32 0.0, %v416
  %v419 = vmul.f32 %v417, 1.442695
  %v420 = vpow.pop %v419
  %v421 = vmul.f32 %v418, 1.442695
  %v422 = vpow.pop %v421
  %v423 = vadd.f32 %v420, 1.0
  %v424 = vlog2.pop %v423
  %v425 = vmul.f32 %v424, 0.6931472
  %v426 = vmul.f32 -0.5, %v420
  %v427 = vadd.f32 %v426, 1.0
  %v428 = vmul.f32 %v427, %v420
  %v429 = vand.u32 2147483647, %v420
  %vm430 = vcmp.lt.f32.partialorder %v429, 0.0004427343
  %v431 = vsel %vm430, %v428, %v425
  %v432 = vadd.f32 %v422, 1.0
  %v433 = vlog2.pop %v432
  %v434 = vmul.f32 %v433, 0.6931472
  %v435 = vmul.f32 -0.5, %v422
  %v436 = vadd.f32 %v435, 1.0
  %v437 = vmul.f32 %v436, %v422
  %v438 = vand.u32 2147483647, %v422
  %vm439 = vcmp.lt.f32.partialorder %v438, 0.0004427343
  %v440 = vsel %vm439, %v437, %v434
  %v441 = vadd.f32 %v409, %v431
  %v442 = vadd.f32 %v410, %v440
  %v443 = vsel %vm411, %v413, %v441
  %v444 = vsel %vm412, %v414, %v442
  %v445 = vld [vmem:[%s4] sm:$0xff]
  %v446 = vld [vmem:[%s4 + $0x8] sm:$0xff]
  %v447 = vld [vmem:[%s4 + $0x10] sm:$0xff]
  %v448 = vld [vmem:[%s4 + $0x18] sm:$0xff]
  %v449 = vld [vmem:[%s4 + $0x20] sm:$0xff]
  %v450 = vld [vmem:[%s4 + $0x28] sm:$0xff]
  %v451 = vld [vmem:[%s4 + $0x30] sm:$0xff]
  %v452 = vld [vmem:[%s4 + $0x38] sm:$0xff]
  %s453 = scalar_lea.vmem %s3, 5
  %v454 = vld [vmem:[%s453] ss:$8 sm:$0x3]
  %v455 = vmul.f32 %v454, 1.442695
  %v456 = vpow.pop %v455
  %v457 = vsub.f32 0.0, %v456
  %v458 = vmul.f32 %v443, %v149
  %v459 = vmul.f32 %v444, %v150
  %v461 = vsel %vm28, %v443, 0
  %v464 = vsel %vm28, %v444, 0
  %v467 = vsel %vm28, %v458, 0
  %v470 = vsel %vm28, %v459, 0
  %472 = vmatprep.subr.mxu0 0.0
  %473 = vmatpush1.msra.mxu0 0.0
  %474 = vmatprep.subr.mxu0 0.0
  %475 = vmatpush1.msra.mxu0 0.0
  %476 = vmatprep.subr.mxu0 0.0
  %477 = vmatpush1.msra.mxu0 0.0
  %478 = vmatprep.subr.mxu0 0.0
  %479 = vmatpush1.msra.mxu0 0.0
  %480 = vmatprep.subr.mxu0 0.0
  %481 = vmatpush1.msra.mxu0 0.0
  %482 = vmatprep.subr.mxu0 0.0
  %483 = vmatpush1.msra.mxu0 0.0
  %484 = vmatprep.subr.mxu0 0.0
  %485 = vmatpush1.msra.mxu0 0.0
  %486 = vmatprep.subr.mxu0 0.0
  %487 = vmatpush1.msra.mxu0 0.0
  %488 = vmatprep.subr.mxu0 0.0
  %489 = vmatpush1.msra.mxu0 0.0
  %490 = vmatprep.subr.mxu0 0.0
  %491 = vmatpush1.msra.mxu0 0.0
  %492 = vmatprep.subr.mxu0 0.0
  %493 = vmatpush1.msra.mxu0 0.0
  %494 = vmatprep.subr.mxu0 0.0
  %495 = vmatpush1.msra.mxu0 0.0
  %496 = vmatprep.subr.mxu0 %v452
  %497 = vmatpush1.msra.mxu0 %v451
  %498 = vmatprep.subr.mxu0 %v450
  %499 = vmatpush1.msra.mxu0 %v449
  %500 = vmatprep.subr.mxu0 %v448
  %501 = vmatpush1.msra.mxu0 %v447
  %502 = vmatprep.subr.mxu0 %v446
  %503 = vmatpush1.msra.mxu0 %v445
  %504 = vmatprep.subr.mxu0 0.0
  %505 = vmatpush2.msra.mxu0 0.0
  %506 = vmatprep.subr.mxu0 0.0
  %507 = vmatpush2.msra.mxu0 0.0
  %508 = vmatprep.subr.mxu0 0.0
  %509 = vmatpush2.msra.mxu0 0.0
  %510 = vmatprep.subr.mxu0 0.0
  %511 = vmatpush2.msra.mxu0 0.0
  %512 = vmatprep.subr.mxu0 0.0
  %513 = vmatpush2.msra.mxu0 0.0
  %514 = vmatprep.subr.mxu0 0.0
  %515 = vmatpush2.msra.mxu0 0.0
  %516 = vmatprep.subr.mxu0 0.0
  %517 = vmatpush2.msra.mxu0 0.0
  %518 = vmatprep.subr.mxu0 0.0
  %519 = vmatpush2.msra.mxu0 0.0
  %520 = vmatprep.subr.mxu0 0.0
  %521 = vmatpush2.msra.mxu0 0.0
  %522 = vmatprep.subr.mxu0 0.0
  %523 = vmatpush2.msra.mxu0 0.0
  %524 = vmatprep.subr.mxu0 0.0
  %525 = vmatpush2.msra.mxu0 0.0
  %526 = vmatprep.subr.mxu0 0.0
  %527 = vmatpush2.msra.mxu0 0.0
  %528 = vmatprep.subr.mxu0 0.0
  %529 = vmatpush2.msra.mxu0 0.0
  %530 = vmatprep.subr.mxu0 0.0
  %531 = vmatpush2.msra.mxu0 0.0
  %532 = vmatprep.subr.mxu0 0.0
  %533 = vmatpush2.msra.mxu0 0.0
  %534 = vmatprep.subr.mxu0 0.0
  %535 = vmatpush2.msra.mxu0 0.0
  %536 = vmatprep.mubr.f32.mxu0 0.0
  %537 = vmatmul.mubr.f32.gmra.mxu0 %v461
  %v538 = vpop.f32.mrf.mxu0
  %v539 = vadd.f32 0.0, %v538
  %v540 = vpop.f32.mrf.mxu0
  %v541 = vadd.f32 0.0, %v540
  %542 = vmatprep.mubr.f32.mxu0 0.0
  %543 = vmatmul.mubr.f32.gmra.mxu0 %v464
  %v544 = vpop.f32.mrf.mxu0
  %v545 = vadd.f32 0.0, %v544
  %v546 = vpop.f32.mrf.mxu0
  %v547 = vadd.f32 0.0, %v546
  %548 = vmatprep.mubr.f32.mxu0 0.0
  %549 = vmatmul.mubr.f32.gmra.mxu0 %v467
  %v550 = vpop.f32.mrf.mxu0
  %v551 = vadd.f32 0.0, %v550
  %v552 = vpop.f32.mrf.mxu0
  %v553 = vadd.f32 0.0, %v552
  %554 = vmatprep.mubr.f32.mxu0 0.0
  %555 = vmatmul.mubr.f32.gmra.mxu0 %v470
  %v556 = vpop.f32.mrf.mxu0
  %v557 = vadd.f32 0.0, %v556
  %v558 = vpop.f32.mrf.mxu0
  %v559 = vadd.f32 0.0, %v558
  %560 = vdwg.mxu0
  %v562 = vlaneseq
  %v563 = vshrl.u32 %v562, 7
  %v564 = vsub.s32 0, %v563
  %v565 = vrot.slane %v457, %v564
  %v566 = vlaneseq
  %v567 = vshrl.u32 %v566, 7
  %v568 = vsub.s32 1, %v567
  %v569 = vrot.slane %v457, %v568
  %v572 = vmul.f32 %v539, %v565
  %v573 = vmul.f32 %v541, %v569
  %v574 = vmul.f32 %v545, %v565
  %v575 = vmul.f32 %v547, %v569
  %v576 = vmul.f32 %v572, 1.442695
  %v577 = vpow.pop %v576
  %v578 = vmul.f32 %v573, 1.442695
  %v579 = vpow.pop %v578
  %v580 = vmul.f32 %v574, 1.442695
  %v581 = vpow.pop %v580
  %v582 = vmul.f32 %v575, 1.442695
  %v583 = vpow.pop %v582
  %v584 = vmul.f32 %v551, %v244
  %v585 = vmul.f32 %v553, %v246
  %v586 = vmul.f32 %v557, %v250
  %v587 = vmul.f32 %v559, %v252
  %v588 = vmul.f32 %v577, 0.0
  %v589 = vmul.f32 %v579, 0.0
  %v590 = vadd.f32 %v588, %v584
  %v591 = vadd.f32 %v589, %v585
  %v592 = vmul.f32 %v590, %v321
  %v593 = vmul.f32 %v591, %v323
  %594 = vmatprep.subr.mxu0 0.0
  %595 = vmatpush1.xpose.msra.mxu0 0.0
  %596 = vmatprep.subr.mxu0 0.0
  %597 = vmatpush1.xpose.msra.mxu0 0.0
  %598 = vmatprep.subr.mxu0 0.0
  %599 = vmatpush1.xpose.msra.mxu0 0.0
  %600 = vmatprep.subr.mxu0 0.0
  %601 = vmatpush1.xpose.msra.mxu0 0.0
  %602 = vmatprep.subr.mxu0 0.0
  %603 = vmatpush1.xpose.msra.mxu0 0.0
  %604 = vmatprep.subr.mxu0 0.0
  %605 = vmatpush1.xpose.msra.mxu0 0.0
  %606 = vmatprep.subr.mxu0 0.0
  %607 = vmatpush1.xpose.msra.mxu0 0.0
  %608 = vmatprep.subr.mxu0 0.0
  %609 = vmatpush1.xpose.msra.mxu0 0.0
  %610 = vmatprep.subr.mxu0 0.0
  %611 = vmatpush1.xpose.msra.mxu0 0.0
  %612 = vmatprep.subr.mxu0 0.0
  %613 = vmatpush1.xpose.msra.mxu0 0.0
  %614 = vmatprep.subr.mxu0 0.0
  %615 = vmatpush1.xpose.msra.mxu0 0.0
  %616 = vmatprep.subr.mxu0 0.0
  %617 = vmatpush1.xpose.msra.mxu0 0.0
  %618 = vmatprep.subr.mxu0 %v452
  %619 = vmatpush1.xpose.msra.mxu0 %v451
  %620 = vmatprep.subr.mxu0 %v450
  %621 = vmatpush1.xpose.msra.mxu0 %v449
  %622 = vmatprep.subr.mxu0 %v448
  %623 = vmatpush1.xpose.msra.mxu0 %v447
  %624 = vmatprep.subr.mxu0 %v446
  %625 = vmatpush1.xpose.msra.mxu0 %v445
  %626 = vmatprep.subr.mxu0 0.0
  %627 = vmatpush2.xpose.msra.mxu0 0.0
  %628 = vmatprep.subr.mxu0 0.0
  %629 = vmatpush2.xpose.msra.mxu0 0.0
  %630 = vmatprep.subr.mxu0 0.0
  %631 = vmatpush2.xpose.msra.mxu0 0.0
  %632 = vmatprep.subr.mxu0 0.0
  %633 = vmatpush2.xpose.msra.mxu0 0.0
  %634 = vmatprep.subr.mxu0 0.0
  %635 = vmatpush2.xpose.msra.mxu0 0.0
  %636 = vmatprep.subr.mxu0 0.0
  %637 = vmatpush2.xpose.msra.mxu0 0.0
  %638 = vmatprep.subr.mxu0 0.0
  %639 = vmatpush2.xpose.msra.mxu0 0.0
  %640 = vmatprep.subr.mxu0 0.0
  %641 = vmatpush2.xpose.msra.mxu0 0.0
  %642 = vmatprep.subr.mxu0 0.0
  %643 = vmatpush2.xpose.msra.mxu0 0.0
  %644 = vmatprep.subr.mxu0 0.0
  %645 = vmatpush2.xpose.msra.mxu0 0.0
  %646 = vmatprep.subr.mxu0 0.0
  %647 = vmatpush2.xpose.msra.mxu0 0.0
  %648 = vmatprep.subr.mxu0 0.0
  %649 = vmatpush2.xpose.msra.mxu0 0.0
  %650 = vmatprep.subr.mxu0 0.0
  %651 = vmatpush2.xpose.msra.mxu0 0.0
  %652 = vmatprep.subr.mxu0 0.0
  %653 = vmatpush2.xpose.msra.mxu0 0.0
  %654 = vmatprep.subr.mxu0 0.0
  %655 = vmatpush2.xpose.msra.mxu0 0.0
  %656 = vmatprep.subr.mxu0 0.0
  %657 = vmatpush2.xpose.msra.mxu0 0.0
  %658 = vmatprep.mubr.f32.mxu0 %v593
  %659 = vmatmul.mubr.f32.gmra.mxu0 %v592
  %v660 = vpop.f32.mrf.mxu0
  %v661 = vadd.f32 0.0, %v660
  %v662 = vpop.f32.mrf.mxu0
  %663 = vdwg.mxu0
  %v666 = vrot.slane %v590, 6
  %v667 = vrot.slane %v591, 6
  %v670 = vmul.f32 %v577, %v666
  %v671 = vmul.f32 %v579, %v667
  %v672 = vadd.f32 %v670, %v584
  %v673 = vadd.f32 %v671, %v585
  %v674 = vmul.f32 %v672, %v321
  %v675 = vmul.f32 %v673, %v323
  %v678 = vrot.slane %v674, 2
  %v679 = vrot.slane %v675, 2
  %682 = vmatprep.subr.mxu0 0.0
  %683 = vmatpush1.xpose.msra.mxu0 0.0
  %684 = vmatprep.subr.mxu0 0.0
  %685 = vmatpush1.xpose.msra.mxu0 0.0
  %686 = vmatprep.subr.mxu0 0.0
  %687 = vmatpush1.xpose.msra.mxu0 0.0
  %688 = vmatprep.subr.mxu0 0.0
  %689 = vmatpush1.xpose.msra.mxu0 0.0
  %690 = vmatprep.subr.mxu0 0.0
  %691 = vmatpush1.xpose.msra.mxu0 0.0
  %692 = vmatprep.subr.mxu0 0.0
  %693 = vmatpush1.xpose.msra.mxu0 0.0
  %694 = vmatprep.subr.mxu0 0.0
  %695 = vmatpush1.xpose.msra.mxu0 0.0
  %696 = vmatprep.subr.mxu0 0.0
  %697 = vmatpush1.xpose.msra.mxu0 0.0
  %698 = vmatprep.subr.mxu0 0.0
  %699 = vmatpush1.xpose.msra.mxu0 0.0
  %700 = vmatprep.subr.mxu0 0.0
  %701 = vmatpush1.xpose.msra.mxu0 0.0
  %702 = vmatprep.subr.mxu0 0.0
  %703 = vmatpush1.xpose.msra.mxu0 0.0
  %704 = vmatprep.subr.mxu0 0.0
  %705 = vmatpush1.xpose.msra.mxu0 0.0
  %706 = vmatprep.subr.mxu0 %v452
  %707 = vmatpush1.xpose.msra.mxu0 %v451
  %708 = vmatprep.subr.mxu0 %v450
  %709 = vmatpush1.xpose.msra.mxu0 %v449
  %710 = vmatprep.subr.mxu0 %v448
  %711 = vmatpush1.xpose.msra.mxu0 %v447
  %712 = vmatprep.subr.mxu0 %v446
  %713 = vmatpush1.xpose.msra.mxu0 %v445
  %714 = vmatprep.subr.mxu0 0.0
  %715 = vmatpush2.xpose.msra.mxu0 0.0
  %716 = vmatprep.subr.mxu0 0.0
  %717 = vmatpush2.xpose.msra.mxu0 0.0
  %718 = vmatprep.subr.mxu0 0.0
  %719 = vmatpush2.xpose.msra.mxu0 0.0
  %720 = vmatprep.subr.mxu0 0.0
  %721 = vmatpush2.xpose.msra.mxu0 0.0
  %722 = vmatprep.subr.mxu0 0.0
  %723 = vmatpush2.xpose.msra.mxu0 0.0
  %724 = vmatprep.subr.mxu0 0.0
  %725 = vmatpush2.xpose.msra.mxu0 0.0
  %726 = vmatprep.subr.mxu0 0.0
  %727 = vmatpush2.xpose.msra.mxu0 0.0
  %728 = vmatprep.subr.mxu0 0.0
  %729 = vmatpush2.xpose.msra.mxu0 0.0
  %730 = vmatprep.subr.mxu0 0.0
  %731 = vmatpush2.xpose.msra.mxu0 0.0
  %732 = vmatprep.subr.mxu0 0.0
  %733 = vmatpush2.xpose.msra.mxu0 0.0
  %734 = vmatprep.subr.mxu0 0.0
  %735 = vmatpush2.xpose.msra.mxu0 0.0
  %736 = vmatprep.subr.mxu0 0.0
  %737 = vmatpush2.xpose.msra.mxu0 0.0
  %738 = vmatprep.subr.mxu0 0.0
  %739 = vmatpush2.xpose.msra.mxu0 0.0
  %740 = vmatprep.subr.mxu0 0.0
  %741 = vmatpush2.xpose.msra.mxu0 0.0
  %742 = vmatprep.subr.mxu0 0.0
  %743 = vmatpush2.xpose.msra.mxu0 0.0
  %744 = vmatprep.subr.mxu0 0.0
  %745 = vmatpush2.xpose.msra.mxu0 0.0
  %746 = vmatprep.mubr.f32.mxu0 %v679
  %747 = vmatmul.mubr.f32.gmra.mxu0 %v678
  %v748 = vpop.f32.mrf.mxu0
  %v749 = vadd.f32 0.0, %v748
  %v750 = vpop.f32.mrf.mxu0
  %751 = vdwg.mxu0
  %v754 = vrot.slane %v672, 6
  %v755 = vrot.slane %v673, 6
  %v758 = vmul.f32 %v577, %v754
  %v759 = vmul.f32 %v579, %v755
  %v760 = vadd.f32 %v758, %v584
  %v761 = vadd.f32 %v759, %v585
  %v762 = vmul.f32 %v760, %v321
  %v763 = vmul.f32 %v761, %v323
  %v766 = vrot.slane %v762, 4
  %v767 = vrot.slane %v763, 4
  %770 = vmatprep.subr.mxu0 0.0
  %771 = vmatpush1.xpose.msra.mxu0 0.0
  %772 = vmatprep.subr.mxu0 0.0
  %773 = vmatpush1.xpose.msra.mxu0 0.0
  %774 = vmatprep.subr.mxu0 0.0
  %775 = vmatpush1.xpose.msra.mxu0 0.0
  %776 = vmatprep.subr.mxu0 0.0
  %777 = vmatpush1.xpose.msra.mxu0 0.0
  %778 = vmatprep.subr.mxu0 0.0
  %779 = vmatpush1.xpose.msra.mxu0 0.0
  %780 = vmatprep.subr.mxu0 0.0
  %781 = vmatpush1.xpose.msra.mxu0 0.0
  %782 = vmatprep.subr.mxu0 0.0
  %783 = vmatpush1.xpose.msra.mxu0 0.0
  %784 = vmatprep.subr.mxu0 0.0
  %785 = vmatpush1.xpose.msra.mxu0 0.0
  %786 = vmatprep.subr.mxu0 0.0
  %787 = vmatpush1.xpose.msra.mxu0 0.0
  %788 = vmatprep.subr.mxu0 0.0
  %789 = vmatpush1.xpose.msra.mxu0 0.0
  %790 = vmatprep.subr.mxu0 0.0
  %791 = vmatpush1.xpose.msra.mxu0 0.0
  %792 = vmatprep.subr.mxu0 0.0
  %793 = vmatpush1.xpose.msra.mxu0 0.0
  %794 = vmatprep.subr.mxu0 %v452
  %795 = vmatpush1.xpose.msra.mxu0 %v451
  %796 = vmatprep.subr.mxu0 %v450
  %797 = vmatpush1.xpose.msra.mxu0 %v449
  %798 = vmatprep.subr.mxu0 %v448
  %799 = vmatpush1.xpose.msra.mxu0 %v447
  %800 = vmatprep.subr.mxu0 %v446
  %801 = vmatpush1.xpose.msra.mxu0 %v445
  %802 = vmatprep.subr.mxu0 0.0
  %803 = vmatpush2.xpose.msra.mxu0 0.0
  %804 = vmatprep.subr.mxu0 0.0
  %805 = vmatpush2.xpose.msra.mxu0 0.0
  %806 = vmatprep.subr.mxu0 0.0
  %807 = vmatpush2.xpose.msra.mxu0 0.0
  %808 = vmatprep.subr.mxu0 0.0
  %809 = vmatpush2.xpose.msra.mxu0 0.0
  %810 = vmatprep.subr.mxu0 0.0
  %811 = vmatpush2.xpose.msra.mxu0 0.0
  %812 = vmatprep.subr.mxu0 0.0
  %813 = vmatpush2.xpose.msra.mxu0 0.0
  %814 = vmatprep.subr.mxu0 0.0
  %815 = vmatpush2.xpose.msra.mxu0 0.0
  %816 = vmatprep.subr.mxu0 0.0
  %817 = vmatpush2.xpose.msra.mxu0 0.0
  %818 = vmatprep.subr.mxu0 0.0
  %819 = vmatpush2.xpose.msra.mxu0 0.0
  %820 = vmatprep.subr.mxu0 0.0
  %821 = vmatpush2.xpose.msra.mxu0 0.0
  %822 = vmatprep.subr.mxu0 0.0
  %823 = vmatpush2.xpose.msra.mxu0 0.0
  %824 = vmatprep.subr.mxu0 0.0
  %825 = vmatpush2.xpose.msra.mxu0 0.0
  %826 = vmatprep.subr.mxu0 0.0
  %827 = vmatpush2.xpose.msra.mxu0 0.0
  %828 = vmatprep.subr.mxu0 0.0
  %829 = vmatpush2.xpose.msra.mxu0 0.0
  %830 = vmatprep.subr.mxu0 0.0
  %831 = vmatpush2.xpose.msra.mxu0 0.0
  %832 = vmatprep.subr.mxu0 0.0
  %833 = vmatpush2.xpose.msra.mxu0 0.0
  %834 = vmatprep.mubr.f32.mxu0 %v767
  %835 = vmatmul.mubr.f32.gmra.mxu0 %v766
  %v836 = vpop.f32.mrf.mxu0
  %v837 = vadd.f32 0.0, %v836
  %v838 = vpop.f32.mrf.mxu0
  %839 = vdwg.mxu0
  %v842 = vrot.slane %v760, 6
  %v843 = vrot.slane %v761, 6
  %v846 = vmul.f32 %v577, %v842
  %v847 = vmul.f32 %v579, %v843
  %v848 = vadd.f32 %v846, %v584
  %v849 = vadd.f32 %v847, %v585
  %v850 = vmul.f32 %v848, %v321
  %v851 = vmul.f32 %v849, %v323
  %v854 = vrot.slane %v850, 6
  %v855 = vrot.slane %v851, 6
  %858 = vmatprep.subr.mxu0 0.0
  %859 = vmatpush1.xpose.msra.mxu0 0.0
  %860 = vmatprep.subr.mxu0 0.0
  %861 = vmatpush1.xpose.msra.mxu0 0.0
  %862 = vmatprep.subr.mxu0 0.0
  %863 = vmatpush1.xpose.msra.mxu0 0.0
  %864 = vmatprep.subr.mxu0 0.0
  %865 = vmatpush1.xpose.msra.mxu0 0.0
  %866 = vmatprep.subr.mxu0 0.0
  %867 = vmatpush1.xpose.msra.mxu0 0.0
  %868 = vmatprep.subr.mxu0 0.0
  %869 = vmatpush1.xpose.msra.mxu0 0.0
  %870 = vmatprep.subr.mxu0 0.0
  %871 = vmatpush1.xpose.msra.mxu0 0.0
  %872 = vmatprep.subr.mxu0 0.0
  %873 = vmatpush1.xpose.msra.mxu0 0.0
  %874 = vmatprep.subr.mxu0 0.0
  %875 = vmatpush1.xpose.msra.mxu0 0.0
  %876 = vmatprep.subr.mxu0 0.0
  %877 = vmatpush1.xpose.msra.mxu0 0.0
  %878 = vmatprep.subr.mxu0 0.0
  %879 = vmatpush1.xpose.msra.mxu0 0.0
  %880 = vmatprep.subr.mxu0 0.0
  %881 = vmatpush1.xpose.msra.mxu0 0.0
  %882 = vmatprep.subr.mxu0 %v452
  %883 = vmatpush1.xpose.msra.mxu0 %v451
  %884 = vmatprep.subr.mxu0 %v450
  %885 = vmatpush1.xpose.msra.mxu0 %v449
  %886 = vmatprep.subr.mxu0 %v448
  %887 = vmatpush1.xpose.msra.mxu0 %v447
  %888 = vmatprep.subr.mxu0 %v446
  %889 = vmatpush1.xpose.msra.mxu0 %v445
  %890 = vmatprep.subr.mxu0 0.0
  %891 = vmatpush2.xpose.msra.mxu0 0.0
  %892 = vmatprep.subr.mxu0 0.0
  %893 = vmatpush2.xpose.msra.mxu0 0.0
  %894 = vmatprep.subr.mxu0 0.0
  %895 = vmatpush2.xpose.msra.mxu0 0.0
  %896 = vmatprep.subr.mxu0 0.0
  %897 = vmatpush2.xpose.msra.mxu0 0.0
  %898 = vmatprep.subr.mxu0 0.0
  %899 = vmatpush2.xpose.msra.mxu0 0.0
  %900 = vmatprep.subr.mxu0 0.0
  %901 = vmatpush2.xpose.msra.mxu0 0.0
  %902 = vmatprep.subr.mxu0 0.0
  %903 = vmatpush2.xpose.msra.mxu0 0.0
  %904 = vmatprep.subr.mxu0 0.0
  %905 = vmatpush2.xpose.msra.mxu0 0.0
  %906 = vmatprep.subr.mxu0 0.0
  %907 = vmatpush2.xpose.msra.mxu0 0.0
  %908 = vmatprep.subr.mxu0 0.0
  %909 = vmatpush2.xpose.msra.mxu0 0.0
  %910 = vmatprep.subr.mxu0 0.0
  %911 = vmatpush2.xpose.msra.mxu0 0.0
  %912 = vmatprep.subr.mxu0 0.0
  %913 = vmatpush2.xpose.msra.mxu0 0.0
  %914 = vmatprep.subr.mxu0 0.0
  %915 = vmatpush2.xpose.msra.mxu0 0.0
  %916 = vmatprep.subr.mxu0 0.0
  %917 = vmatpush2.xpose.msra.mxu0 0.0
  %918 = vmatprep.subr.mxu0 0.0
  %919 = vmatpush2.xpose.msra.mxu0 0.0
  %920 = vmatprep.subr.mxu0 0.0
  %921 = vmatpush2.xpose.msra.mxu0 0.0
  %922 = vmatprep.mubr.f32.mxu0 %v855
  %923 = vmatmul.mubr.f32.gmra.mxu0 %v854
  %v924 = vpop.f32.mrf.mxu0
  %v925 = vadd.f32 0.0, %v924
  %v926 = vpop.f32.mrf.mxu0
  %927 = vdwg.mxu0
  %v930 = vrot.slane %v848, 6
  %v931 = vrot.slane %v849, 6
  %v934 = vmul.f32 %v581, %v930
  %v935 = vmul.f32 %v583, %v931
  %v936 = vadd.f32 %v934, %v586
  %v937 = vadd.f32 %v935, %v587
  %v938 = vmul.f32 %v936, %v327
  %v939 = vmul.f32 %v937, %v329
  %940 = vmatprep.subr.mxu0 0.0
  %941 = vmatpush1.xpose.msra.mxu0 0.0
  %942 = vmatprep.subr.mxu0 0.0
  %943 = vmatpush1.xpose.msra.mxu0 0.0
  %944 = vmatprep.subr.mxu0 0.0
  %945 = vmatpush1.xpose.msra.mxu0 0.0
  %946 = vmatprep.subr.mxu0 0.0
  %947 = vmatpush1.xpose.msra.mxu0 0.0
  %948 = vmatprep.subr.mxu0 0.0
  %949 = vmatpush1.xpose.msra.mxu0 0.0
  %950 = vmatprep.subr.mxu0 0.0
  %951 = vmatpush1.xpose.msra.mxu0 0.0
  %952 = vmatprep.subr.mxu0 0.0
  %953 = vmatpush1.xpose.msra.mxu0 0.0
  %954 = vmatprep.subr.mxu0 0.0
  %955 = vmatpush1.xpose.msra.mxu0 0.0
  %956 = vmatprep.subr.mxu0 0.0
  %957 = vmatpush1.xpose.msra.mxu0 0.0
  %958 = vmatprep.subr.mxu0 0.0
  %959 = vmatpush1.xpose.msra.mxu0 0.0
  %960 = vmatprep.subr.mxu0 0.0
  %961 = vmatpush1.xpose.msra.mxu0 0.0
  %962 = vmatprep.subr.mxu0 0.0
  %963 = vmatpush1.xpose.msra.mxu0 0.0
  %964 = vmatprep.subr.mxu0 %v452
  %965 = vmatpush1.xpose.msra.mxu0 %v451
  %966 = vmatprep.subr.mxu0 %v450
  %967 = vmatpush1.xpose.msra.mxu0 %v449
  %968 = vmatprep.subr.mxu0 %v448
  %969 = vmatpush1.xpose.msra.mxu0 %v447
  %970 = vmatprep.subr.mxu0 %v446
  %971 = vmatpush1.xpose.msra.mxu0 %v445
  %972 = vmatprep.subr.mxu0 0.0
  %973 = vmatpush2.xpose.msra.mxu0 0.0
  %974 = vmatprep.subr.mxu0 0.0
  %975 = vmatpush2.xpose.msra.mxu0 0.0
  %976 = vmatprep.subr.mxu0 0.0
  %977 = vmatpush2.xpose.msra.mxu0 0.0
  %978 = vmatprep.subr.mxu0 0.0
  %979 = vmatpush2.xpose.msra.mxu0 0.0
  %980 = vmatprep.subr.mxu0 0.0
  %981 = vmatpush2.xpose.msra.mxu0 0.0
  %982 = vmatprep.subr.mxu0 0.0
  %983 = vmatpush2.xpose.msra.mxu0 0.0
  %984 = vmatprep.subr.mxu0 0.0
  %985 = vmatpush2.xpose.msra.mxu0 0.0
  %986 = vmatprep.subr.mxu0 0.0
  %987 = vmatpush2.xpose.msra.mxu0 0.0
  %988 = vmatprep.subr.mxu0 0.0
  %989 = vmatpush2.xpose.msra.mxu0 0.0
  %990 = vmatprep.subr.mxu0 0.0
  %991 = vmatpush2.xpose.msra.mxu0 0.0
  %992 = vmatprep.subr.mxu0 0.0
  %993 = vmatpush2.xpose.msra.mxu0 0.0
  %994 = vmatprep.subr.mxu0 0.0
  %995 = vmatpush2.xpose.msra.mxu0 0.0
  %996 = vmatprep.subr.mxu0 0.0
  %997 = vmatpush2.xpose.msra.mxu0 0.0
  %998 = vmatprep.subr.mxu0 0.0
  %999 = vmatpush2.xpose.msra.mxu0 0.0
  %1000 = vmatprep.subr.mxu0 0.0
  %1001 = vmatpush2.xpose.msra.mxu0 0.0
  %1002 = vmatprep.subr.mxu0 0.0
  %1003 = vmatpush2.xpose.msra.mxu0 0.0
  %1004 = vmatprep.mubr.f32.mxu0 %v939
  %1005 = vmatmul.mubr.f32.gmra.mxu0 %v938
  %v1006 = vpop.f32.mrf.mxu0
  %v1007 = vadd.f32 0.0, %v1006
  %v1008 = vpop.f32.mrf.mxu0
  %1009 = vdwg.mxu0
  %v1012 = vrot.slane %v936, 6
  %v1013 = vrot.slane %v937, 6
  %v1016 = vmul.f32 %v581, %v1012
  %v1017 = vmul.f32 %v583, %v1013
  %v1018 = vadd.f32 %v1016, %v586
  %v1019 = vadd.f32 %v1017, %v587
  %v1020 = vmul.f32 %v1018, %v327
  %v1021 = vmul.f32 %v1019, %v329
  %v1024 = vrot.slane %v1020, 2
  %v1025 = vrot.slane %v1021, 2
  %1028 = vmatprep.subr.mxu0 0.0
  %1029 = vmatpush1.xpose.msra.mxu0 0.0
  %1030 = vmatprep.subr.mxu0 0.0
  %1031 = vmatpush1.xpose.msra.mxu0 0.0
  %1032 = vmatprep.subr.mxu0 0.0
  %1033 = vmatpush1.xpose.msra.mxu0 0.0
  %1034 = vmatprep.subr.mxu0 0.0
  %1035 = vmatpush1.xpose.msra.mxu0 0.0
  %1036 = vmatprep.subr.mxu0 0.0
  %1037 = vmatpush1.xpose.msra.mxu0 0.0
  %1038 = vmatprep.subr.mxu0 0.0
  %1039 = vmatpush1.xpose.msra.mxu0 0.0
  %1040 = vmatprep.subr.mxu0 0.0
  %1041 = vmatpush1.xpose.msra.mxu0 0.0
  %1042 = vmatprep.subr.mxu0 0.0
  %1043 = vmatpush1.xpose.msra.mxu0 0.0
  %1044 = vmatprep.subr.mxu0 0.0
  %1045 = vmatpush1.xpose.msra.mxu0 0.0
  %1046 = vmatprep.subr.mxu0 0.0
  %1047 = vmatpush1.xpose.msra.mxu0 0.0
  %1048 = vmatprep.subr.mxu0 0.0
  %1049 = vmatpush1.xpose.msra.mxu0 0.0
  %1050 = vmatprep.subr.mxu0 0.0
  %1051 = vmatpush1.xpose.msra.mxu0 0.0
  %1052 = vmatprep.subr.mxu0 %v452
  %1053 = vmatpush1.xpose.msra.mxu0 %v451
  %1054 = vmatprep.subr.mxu0 %v450
  %1055 = vmatpush1.xpose.msra.mxu0 %v449
  %1056 = vmatprep.subr.mxu0 %v448
  %1057 = vmatpush1.xpose.msra.mxu0 %v447
  %1058 = vmatprep.subr.mxu0 %v446
  %1059 = vmatpush1.xpose.msra.mxu0 %v445
  %1060 = vmatprep.subr.mxu0 0.0
  %1061 = vmatpush2.xpose.msra.mxu0 0.0
  %1062 = vmatprep.subr.mxu0 0.0
  %1063 = vmatpush2.xpose.msra.mxu0 0.0
  %1064 = vmatprep.subr.mxu0 0.0
  %1065 = vmatpush2.xpose.msra.mxu0 0.0
  %1066 = vmatprep.subr.mxu0 0.0
  %1067 = vmatpush2.xpose.msra.mxu0 0.0
  %1068 = vmatprep.subr.mxu0 0.0
  %1069 = vmatpush2.xpose.msra.mxu0 0.0
  %1070 = vmatprep.subr.mxu0 0.0
  %1071 = vmatpush2.xpose.msra.mxu0 0.0
  %1072 = vmatprep.subr.mxu0 0.0
  %1073 = vmatpush2.xpose.msra.mxu0 0.0
  %1074 = vmatprep.subr.mxu0 0.0
  %1075 = vmatpush2.xpose.msra.mxu0 0.0
  %1076 = vmatprep.subr.mxu0 0.0
  %1077 = vmatpush2.xpose.msra.mxu0 0.0
  %1078 = vmatprep.subr.mxu0 0.0
  %1079 = vmatpush2.xpose.msra.mxu0 0.0
  %1080 = vmatprep.subr.mxu0 0.0
  %1081 = vmatpush2.xpose.msra.mxu0 0.0
  %1082 = vmatprep.subr.mxu0 0.0
  %1083 = vmatpush2.xpose.msra.mxu0 0.0
  %1084 = vmatprep.subr.mxu0 0.0
  %1085 = vmatpush2.xpose.msra.mxu0 0.0
  %1086 = vmatprep.subr.mxu0 0.0
  %1087 = vmatpush2.xpose.msra.mxu0 0.0
  %1088 = vmatprep.subr.mxu0 0.0
  %1089 = vmatpush2.xpose.msra.mxu0 0.0
  %1090 = vmatprep.subr.mxu0 0.0
  %1091 = vmatpush2.xpose.msra.mxu0 0.0
  %1092 = vmatprep.mubr.f32.mxu0 %v1025
  %1093 = vmatmul.mubr.f32.gmra.mxu0 %v1024
  %v1094 = vpop.f32.mrf.mxu0
  %v1095 = vadd.f32 0.0, %v1094
  %v1096 = vpop.f32.mrf.mxu0
  %1097 = vdwg.mxu0
  %v1100 = vrot.slane %v1018, 6
  %v1101 = vrot.slane %v1019, 6
  %v1104 = vmul.f32 %v581, %v1100
  %v1105 = vmul.f32 %v583, %v1101
  %v1106 = vadd.f32 %v1104, %v586
  %v1107 = vadd.f32 %v1105, %v587
  %v1108 = vmul.f32 %v1106, %v327
  %v1109 = vmul.f32 %v1107, %v329
  %v1112 = vrot.slane %v1108, 4
  %v1113 = vrot.slane %v1109, 4
  %1116 = vmatprep.subr.mxu0 0.0
  %1117 = vmatpush1.xpose.msra.mxu0 0.0
  %1118 = vmatprep.subr.mxu0 0.0
  %1119 = vmatpush1.xpose.msra.mxu0 0.0
  %1120 = vmatprep.subr.mxu0 0.0
  %1121 = vmatpush1.xpose.msra.mxu0 0.0
  %1122 = vmatprep.subr.mxu0 0.0
  %1123 = vmatpush1.xpose.msra.mxu0 0.0
  %1124 = vmatprep.subr.mxu0 0.0
  %1125 = vmatpush1.xpose.msra.mxu0 0.0
  %1126 = vmatprep.subr.mxu0 0.0
  %1127 = vmatpush1.xpose.msra.mxu0 0.0
  %1128 = vmatprep.subr.mxu0 0.0
  %1129 = vmatpush1.xpose.msra.mxu0 0.0
  %1130 = vmatprep.subr.mxu0 0.0
  %1131 = vmatpush1.xpose.msra.mxu0 0.0
  %1132 = vmatprep.subr.mxu0 0.0
  %1133 = vmatpush1.xpose.msra.mxu0 0.0
  %1134 = vmatprep.subr.mxu0 0.0
  %1135 = vmatpush1.xpose.msra.mxu0 0.0
  %1136 = vmatprep.subr.mxu0 0.0
  %1137 = vmatpush1.xpose.msra.mxu0 0.0
  %1138 = vmatprep.subr.mxu0 0.0
  %1139 = vmatpush1.xpose.msra.mxu0 0.0
  %1140 = vmatprep.subr.mxu0 %v452
  %1141 = vmatpush1.xpose.msra.mxu0 %v451
  %1142 = vmatprep.subr.mxu0 %v450
  %1143 = vmatpush1.xpose.msra.mxu0 %v449
  %1144 = vmatprep.subr.mxu0 %v448
  %1145 = vmatpush1.xpose.msra.mxu0 %v447
  %1146 = vmatprep.subr.mxu0 %v446
  %1147 = vmatpush1.xpose.msra.mxu0 %v445
  %1148 = vmatprep.subr.mxu0 0.0
  %1149 = vmatpush2.xpose.msra.mxu0 0.0
  %1150 = vmatprep.subr.mxu0 0.0
  %1151 = vmatpush2.xpose.msra.mxu0 0.0
  %1152 = vmatprep.subr.mxu0 0.0
  %1153 = vmatpush2.xpose.msra.mxu0 0.0
  %1154 = vmatprep.subr.mxu0 0.0
  %1155 = vmatpush2.xpose.msra.mxu0 0.0
  %1156 = vmatprep.subr.mxu0 0.0
  %1157 = vmatpush2.xpose.msra.mxu0 0.0
  %1158 = vmatprep.subr.mxu0 0.0
  %1159 = vmatpush2.xpose.msra.mxu0 0.0
  %1160 = vmatprep.subr.mxu0 0.0
  %1161 = vmatpush2.xpose.msra.mxu0 0.0
  %1162 = vmatprep.subr.mxu0 0.0
  %1163 = vmatpush2.xpose.msra.mxu0 0.0
  %1164 = vmatprep.subr.mxu0 0.0
  %1165 = vmatpush2.xpose.msra.mxu0 0.0
  %1166 = vmatprep.subr.mxu0 0.0
  %1167 = vmatpush2.xpose.msra.mxu0 0.0
  %1168 = vmatprep.subr.mxu0 0.0
  %1169 = vmatpush2.xpose.msra.mxu0 0.0
  %1170 = vmatprep.subr.mxu0 0.0
  %1171 = vmatpush2.xpose.msra.mxu0 0.0
  %1172 = vmatprep.subr.mxu0 0.0
  %1173 = vmatpush2.xpose.msra.mxu0 0.0
  %1174 = vmatprep.subr.mxu0 0.0
  %1175 = vmatpush2.xpose.msra.mxu0 0.0
  %1176 = vmatprep.subr.mxu0 0.0
  %1177 = vmatpush2.xpose.msra.mxu0 0.0
  %1178 = vmatprep.subr.mxu0 0.0
  %1179 = vmatpush2.xpose.msra.mxu0 0.0
  %1180 = vmatprep.mubr.f32.mxu0 %v1113
  %1181 = vmatmul.mubr.f32.gmra.mxu0 %v1112
  %v1182 = vpop.f32.mrf.mxu0
  %v1183 = vadd.f32 0.0, %v1182
  %v1184 = vpop.f32.mrf.mxu0
  %1185 = vdwg.mxu0
  %v1188 = vrot.slane %v1106, 6
  %v1189 = vrot.slane %v1107, 6
  %v1192 = vmul.f32 %v581, %v1188
  %v1193 = vmul.f32 %v583, %v1189
  %v1194 = vadd.f32 %v1192, %v586
  %v1195 = vadd.f32 %v1193, %v587
  %v1196 = vmul.f32 %v1194, %v327
  %v1197 = vmul.f32 %v1195, %v329
  %v1200 = vrot.slane %v1196, 6
  %v1201 = vrot.slane %v1197, 6
  %1204 = vmatprep.subr.mxu0 0.0
  %1205 = vmatpush1.xpose.msra.mxu0 0.0
  %1206 = vmatprep.subr.mxu0 0.0
  %1207 = vmatpush1.xpose.msra.mxu0 0.0
  %1208 = vmatprep.subr.mxu0 0.0
  %1209 = vmatpush1.xpose.msra.mxu0 0.0
  %1210 = vmatprep.subr.mxu0 0.0
  %1211 = vmatpush1.xpose.msra.mxu0 0.0
  %1212 = vmatprep.subr.mxu0 0.0
  %1213 = vmatpush1.xpose.msra.mxu0 0.0
  %1214 = vmatprep.subr.mxu0 0.0
  %1215 = vmatpush1.xpose.msra.mxu0 0.0
  %1216 = vmatprep.subr.mxu0 0.0
  %1217 = vmatpush1.xpose.msra.mxu0 0.0
  %1218 = vmatprep.subr.mxu0 0.0
  %1219 = vmatpush1.xpose.msra.mxu0 0.0
  %1220 = vmatprep.subr.mxu0 0.0
  %1221 = vmatpush1.xpose.msra.mxu0 0.0
  %1222 = vmatprep.subr.mxu0 0.0
  %1223 = vmatpush1.xpose.msra.mxu0 0.0
  %1224 = vmatprep.subr.mxu0 0.0
  %1225 = vmatpush1.xpose.msra.mxu0 0.0
  %1226 = vmatprep.subr.mxu0 0.0
  %1227 = vmatpush1.xpose.msra.mxu0 0.0
  %1228 = vmatprep.subr.mxu0 %v452
  %1229 = vmatpush1.xpose.msra.mxu0 %v451
  %1230 = vmatprep.subr.mxu0 %v450
  %1231 = vmatpush1.xpose.msra.mxu0 %v449
  %1232 = vmatprep.subr.mxu0 %v448
  %1233 = vmatpush1.xpose.msra.mxu0 %v447
  %1234 = vmatprep.subr.mxu0 %v446
  %1235 = vmatpush1.xpose.msra.mxu0 %v445
  %1236 = vmatprep.subr.mxu0 0.0
  %1237 = vmatpush2.xpose.msra.mxu0 0.0
  %1238 = vmatprep.subr.mxu0 0.0
  %1239 = vmatpush2.xpose.msra.mxu0 0.0
  %1240 = vmatprep.subr.mxu0 0.0
  %1241 = vmatpush2.xpose.msra.mxu0 0.0
  %1242 = vmatprep.subr.mxu0 0.0
  %1243 = vmatpush2.xpose.msra.mxu0 0.0
  %1244 = vmatprep.subr.mxu0 0.0
  %1245 = vmatpush2.xpose.msra.mxu0 0.0
  %1246 = vmatprep.subr.mxu0 0.0
  %1247 = vmatpush2.xpose.msra.mxu0 0.0
  %1248 = vmatprep.subr.mxu0 0.0
  %1249 = vmatpush2.xpose.msra.mxu0 0.0
  %1250 = vmatprep.subr.mxu0 0.0
  %1251 = vmatpush2.xpose.msra.mxu0 0.0
  %1252 = vmatprep.subr.mxu0 0.0
  %1253 = vmatpush2.xpose.msra.mxu0 0.0
  %1254 = vmatprep.subr.mxu0 0.0
  %1255 = vmatpush2.xpose.msra.mxu0 0.0
  %1256 = vmatprep.subr.mxu0 0.0
  %1257 = vmatpush2.xpose.msra.mxu0 0.0
  %1258 = vmatprep.subr.mxu0 0.0
  %1259 = vmatpush2.xpose.msra.mxu0 0.0
  %1260 = vmatprep.subr.mxu0 0.0
  %1261 = vmatpush2.xpose.msra.mxu0 0.0
  %1262 = vmatprep.subr.mxu0 0.0
  %1263 = vmatpush2.xpose.msra.mxu0 0.0
  %1264 = vmatprep.subr.mxu0 0.0
  %1265 = vmatpush2.xpose.msra.mxu0 0.0
  %1266 = vmatprep.subr.mxu0 0.0
  %1267 = vmatpush2.xpose.msra.mxu0 0.0
  %1268 = vmatprep.mubr.f32.mxu0 %v1201
  %1269 = vmatmul.mubr.f32.gmra.mxu0 %v1200
  %v1270 = vpop.f32.mrf.mxu0
  %v1271 = vadd.f32 0.0, %v1270
  %v1272 = vpop.f32.mrf.mxu0
  %1273 = vdwg.mxu0
  %v1275 = vrot.slane %v749, 6
  %v1278 = vrot.slane %v837, 4
  %v1281 = vrot.slane %v925, 2
  %v1284 = vrot.slane %v1095, 6
  %v1287 = vrot.slane %v1183, 4
  %v1290 = vrot.slane %v1271, 2
  %vm1292 = vcmask 1041408
  %v1293 = vsel %vm1292, %v661, %v1275
  %vm1294 = vcmask 1043456
  %v1295 = vsel %vm1294, %v1293, %v1278
  %vm1296 = vcmask 1045504
  %v1297 = vsel %vm1296, %v1295, %v1281
  %v1298 = vsel %vm1292, %v1007, %v1284
  %v1299 = vsel %vm1294, %v1298, %v1287
  %v1300 = vsel %vm1296, %v1299, %v1290
  %v1301 = vld [vmem:[%s3 + $0x4] ss:$0 sm:$0xff]
  %v1302 = vmul.f32 %v149, %v1301
  %v1303 = vmul.f32 %v150, %v1301
  %v1304 = vadd.f32 %v1297, %v1302
  %v1305 = vadd.f32 %v1300, %v1303
  %v1306 = vxor.u32 %v108, 2147483648
  %v1307 = vxor.u32 %v113, 2147483648
  %v1308 = vmul.f32 %v1306, 1.442695
  %v1309 = vpow.pop %v1308
  %v1310 = vmul.f32 %v1307, 1.442695
  %v1311 = vpow.pop %v1310
  %v1312 = vadd.f32 %v1309, 1.0
  %v1313 = vadd.f32 %v1311, 1.0
  %v1314 = vrcp.pop %v1312
  %v1315 = vmul.f32 1.0, %v1314
  %v1316 = vrcp.pop %v1313
  %v1317 = vmul.f32 1.0, %v1316
  %v1318 = vmul.f32 %v108, %v1315
  %v1319 = vmul.f32 %v113, %v1317
  %1322 = vrot.lane.b32.xlu0 %v1318, 96
  %v1323 = vpop.permute.xlu0 %1322
  %1324 = vrot.lane.b32.xlu0 %v1319, 96
  %v1325 = vpop.permute.xlu0 %1324
  %v1328 = vmul.f32 %v1304, %v1323
  %v1329 = vmul.f32 %v1305, %v1325
  %1334 = vrot.lane.b32.xlu0 %v155, 96
  %v1335 = vpop.permute.xlu0 %1334
  %1336 = vrot.lane.b32.xlu0 %v160, 96
  %v1337 = vpop.permute.xlu0 %1336
  %1338 = vrot.lane.b32.xlu0 %v165, 96
  %v1339 = vpop.permute.xlu0 %1338
  %1340 = vrot.lane.b32.xlu0 %v170, 96
  %v1341 = vpop.permute.xlu0 %1340
  %v1347 = vsel %vm28, %v1328, 0
  %v1350 = vsel %vm28, %v1329, 0
  %1352 = vmatprep.subr.mxu0 0.0
  %1353 = vmatpush1.msra.mxu0 0.0
  %1354 = vmatprep.subr.mxu0 0.0
  %1355 = vmatpush1.msra.mxu0 0.0
  %1356 = vmatprep.subr.mxu0 0.0
  %1357 = vmatpush1.msra.mxu0 0.0
  %1358 = vmatprep.subr.mxu0 0.0
  %1359 = vmatpush1.msra.mxu0 0.0
  %1360 = vmatprep.subr.mxu0 0.0
  %1361 = vmatpush1.msra.mxu0 0.0
  %1362 = vmatprep.subr.mxu0 0.0
  %1363 = vmatpush1.msra.mxu0 0.0
  %1364 = vmatprep.subr.mxu0 0.0
  %1365 = vmatpush1.msra.mxu0 0.0
  %1366 = vmatprep.subr.mxu0 0.0
  %1367 = vmatpush1.msra.mxu0 0.0
  %1368 = vmatprep.subr.mxu0 0.0
  %1369 = vmatpush1.msra.mxu0 0.0
  %1370 = vmatprep.subr.mxu0 0.0
  %1371 = vmatpush1.msra.mxu0 0.0
  %1372 = vmatprep.subr.mxu0 0.0
  %1373 = vmatpush1.msra.mxu0 0.0
  %1374 = vmatprep.subr.mxu0 0.0
  %1375 = vmatpush1.msra.mxu0 0.0
  %1376 = vmatprep.subr.mxu0 0.0
  %1377 = vmatpush1.msra.mxu0 %v1341
  %1378 = vmatprep.subr.mxu0 0.0
  %1379 = vmatpush1.msra.mxu0 %v1339
  %1380 = vmatprep.subr.mxu0 0.0
  %1381 = vmatpush1.msra.mxu0 %v1337
  %1382 = vmatprep.subr.mxu0 0.0
  %1383 = vmatpush1.msra.mxu0 %v1335
  %1384 = vmatprep.subr.mxu0 0.0
  %1385 = vmatpush2.msra.mxu0 0.0
  %1386 = vmatprep.subr.mxu0 0.0
  %1387 = vmatpush2.msra.mxu0 0.0
  %1388 = vmatprep.subr.mxu0 0.0
  %1389 = vmatpush2.msra.mxu0 0.0
  %1390 = vmatprep.subr.mxu0 0.0
  %1391 = vmatpush2.msra.mxu0 0.0
  %1392 = vmatprep.subr.mxu0 0.0
  %1393 = vmatpush2.msra.mxu0 0.0
  %1394 = vmatprep.subr.mxu0 0.0
  %1395 = vmatpush2.msra.mxu0 0.0
  %1396 = vmatprep.subr.mxu0 0.0
  %1397 = vmatpush2.msra.mxu0 0.0
  %1398 = vmatprep.subr.mxu0 0.0
  %1399 = vmatpush2.msra.mxu0 0.0
  %1400 = vmatprep.subr.mxu0 0.0
  %1401 = vmatpush2.msra.mxu0 0.0
  %1402 = vmatprep.subr.mxu0 0.0
  %1403 = vmatpush2.msra.mxu0 0.0
  %1404 = vmatprep.subr.mxu0 0.0
  %1405 = vmatpush2.msra.mxu0 0.0
  %1406 = vmatprep.subr.mxu0 0.0
  %1407 = vmatpush2.msra.mxu0 0.0
  %1408 = vmatprep.subr.mxu0 0.0
  %1409 = vmatpush2.msra.mxu0 0.0
  %1410 = vmatprep.subr.mxu0 0.0
  %1411 = vmatpush2.msra.mxu0 0.0
  %1412 = vmatprep.subr.mxu0 0.0
  %1413 = vmatpush2.msra.mxu0 0.0
  %1414 = vmatprep.subr.mxu0 0.0
  %1415 = vmatpush2.msra.mxu0 0.0
  %1416 = vmatprep.mubr.f32.mxu0 0.0
  %1417 = vmatmul.mubr.f32.gmra.mxu0 %v1347
  %v1418 = vpop.f32.mrf.mxu0
  %v1419 = vadd.f32 0.0, %v1418
  %v1420 = vpop.f32.mrf.mxu0
  %1421 = vmatprep.mubr.f32.mxu0 0.0
  %1422 = vmatmul.mubr.f32.gmra.mxu0 %v1350
  %v1423 = vpop.f32.mrf.mxu0
  %v1424 = vadd.f32 0.0, %v1423
  %v1425 = vpop.f32.mrf.mxu0
  %1426 = vdwg.mxu0
  %1427 = vst.msk [vmem:[%s5] sm:$0xff] %vm28, %v1419
  %1428 = vst.msk [vmem:[%s5 + $0x8] sm:$0xff] %vm28, %v1424
  // Predicated region
  $region22: #{mamba_forward.1} parent=0 // pred_check
    _
  $region23: #{mamba_forward.1} parent=0 // pred_check_branch
    %1430 = sbr.rel (0) target = $region25
  $region24: #{mamba_forward.1} parent=0 // pred_region
    _
  $region25: #{mamba_forward.1} parent=0 // pred_fallthru
    _
  // Predicated region
  $region26: #{mamba_forward.1} parent=0 // pred_check
    _
  $region27: #{mamba_forward.1} parent=0 // pred_check_branch
    %1432 = sbr.rel (0) target = $region29
  $region28: #{mamba_forward.1} parent=0 // pred_region
    _
  $region29: #{mamba_forward.1} parent=0 // pred_fallthru
    _

</llo_original>
